<compile_context>
chip_gen: v5e
topology: v5e:2x2
jax: 0.10.0
libtpu: 0.0.40
codegen_flags: <defaults>
</compile_context>

<pallas_src>
import jax
import jax.numpy as jnp
import numpy as np
from jax.experimental import pallas as pl
from jax.experimental.pallas import tpu as pltpu


def ealstm_kernel(x_ref, x_s_ref, w_ih_ref, w_hh_ref, w_sh_ref, b_ref, b_s_ref,
                  h_n_ref, c_n_ref, xproj_sc):
    T, Bb, D = x_ref.shape
    H = w_sh_ref.shape[1]

    # ---- static input gate: computed once per batch block ----
    i_gate = jax.nn.sigmoid(
        jnp.dot(x_s_ref[...], w_sh_ref[...], preferred_element_type=jnp.float32)
        + b_s_ref[...])                                            # (Bb, H)

    # ---- whole-sequence input projection: ONE (T*Bb, D) @ (D, 3H) MXU pass ----
    x_flat = x_ref[...].reshape(T * Bb, D)
    xproj_sc[...] = (jnp.dot(x_flat, w_ih_ref[...],
                             preferred_element_type=jnp.float32)
                     + b_ref[...])                                 # (T*Bb, 3H) packed

    # ---- invariant recurrence weight hoisted out of the time loop ----
    w_hh = w_hh_ref[...]                                           # (H, 3H) packed

    def step(t, carry):
        h, c = carry
        off = pl.multiple_of(t * Bb, Bb)
        # single MXU push/pop per step; packed (Bb, 3H) gates
        gates = (jnp.dot(h, w_hh, preferred_element_type=jnp.float32)
                 + xproj_sc[pl.ds(off, Bb), :])
        fo = jax.nn.sigmoid(gates[:, :2 * H])        # one EUP pass covers f and o
        g = jnp.tanh(gates[:, 2 * H:])
        c1 = fo[:, :H] * c + i_gate * g
        h1 = fo[:, H:] * jnp.tanh(c1)
        h_n_ref[t] = h1
        c_n_ref[t] = c1
        return h1, c1

    h0 = jnp.zeros((Bb, H), jnp.float32)
    c0 = jnp.zeros((Bb, H), jnp.float32)
    # Full unroll only when T is small; partial unroll keeps LLO visibility without
    # instruction-memory blow-up / vreg pressure at mlstream-scale T (~365).
    unroll = True if T <= 64 else 8
    jax.lax.fori_loop(0, T, step, (h0, c0), unroll=unroll)


def _ealstm_model_forward_impl(x_d, x_s, params):
    """x_d: [batch, seq, n_dyn] (batch_first), x_s: [batch, n_stat]."""
    B, T, D = x_d.shape
    S = x_s.shape[1]
    H = params["w_sh"].shape[1]

    # Megacore split over batch (2 TCs on v7x); a sequential no-op on v5e/v6e.
    nb = 2 if (B >= 16 and B % 16 == 0) else 1
    Bb = B // nb

    # Seq-major input (cheap: only D dynamic features). Outputs come back seq-major.
    x_seq = jnp.transpose(x_d, (1, 0, 2))                          # (T, B, D)

    w_ih, w_hh, bias = params["w_ih"], params["w_hh"], params["bias"]

    # Advisory cost estimate for the XLA scheduler.
    flops = 2 * T * B * D * 3 * H + 2 * B * S * H + 2 * T * B * H * 3 * H + 8 * T * B * H
    transcendentals = B * H + 4 * T * B * H
    bytes_accessed = 4 * (T * B * D + B * S + D * 3 * H + H * 3 * H + S * H
                          + 4 * H + 2 * T * B * H)

    # Per-core resident VMEM: pipelined x / x_s / weight blocks (x2 buffers),
    # packed projection scratch, both output blocks (x2 buffers).
    vmem_bytes = 4 * (2 * T * Bb * D + 2 * Bb * S + T * Bb * 3 * H
                      + 2 * 2 * T * Bb * H
                      + 2 * (D * 3 * H + H * 3 * H + S * H + 4 * H))
    # TODO(synk): time-chunk the projection/outputs (emit_pipeline over T) for
    # mlstream-scale T*B*H instead of the all-resident design guarded here.
    assert vmem_bytes < (40 << 20), "all-resident VMEM design exceeds budget"
    vmem_limit = int(min(max(2 * vmem_bytes, 4 << 20), 96 << 20))

    grid_spec = pltpu.PrefetchScalarGridSpec(
        num_scalar_prefetch=0,
        grid=(nb,),
        in_specs=[
            pl.BlockSpec((T, Bb, D), lambda b: (0, b, 0)),         # x (seq-major)
            pl.BlockSpec((Bb, S), lambda b: (b, 0)),               # x_s
            pl.BlockSpec((D, 3 * H), lambda b: (0, 0)),            # W_ih (packed)
            pl.BlockSpec((H, 3 * H), lambda b: (0, 0)),            # W_hh (packed)
            pl.BlockSpec((S, H), lambda b: (0, 0)),                # W_sh
            pl.BlockSpec((1, 3 * H), lambda b: (0, 0)),            # bias (packed)
            pl.BlockSpec((1, H), lambda b: (0, 0)),                # bias_s
        ],
        out_specs=(
            pl.BlockSpec((T, Bb, H), lambda b: (0, b, 0)),         # h_n (seq-major)
            pl.BlockSpec((T, Bb, H), lambda b: (0, b, 0)),         # c_n (seq-major)
        ),
        scratch_shapes=[pltpu.VMEM((T * Bb, 3 * H), jnp.float32)],  # packed x @ W_ih
    )

    h_seq, c_seq = pl.pallas_call(
        ealstm_kernel,
        out_shape=(jax.ShapeDtypeStruct((T, B, H), jnp.float32),
                   jax.ShapeDtypeStruct((T, B, H), jnp.float32)),
        grid_spec=grid_spec,
        compiler_params=pltpu.CompilerParams(
            dimension_semantics=("parallel",),
            vmem_limit_bytes=vmem_limit),
        cost_estimate=pl.CostEstimate(flops=flops,
                                      transcendentals=transcendentals,
                                      bytes_accessed=bytes_accessed),
    )(x_seq, x_s, w_ih, w_hh, params["w_sh"], bias, params["bias_s"])

    # TODO(synk): at mlstream scale (T~365, B>=256) write h/c batch-major from the
    # kernel (strided stores) instead of these two XLA HBM transposes.
    h_n = jnp.transpose(h_seq, (1, 0, 2))                          # [batch, seq, H]
    c_n = jnp.transpose(c_seq, (1, 0, 2))

    # Final FC on the last hidden state (dropout p=0.0 is identity) — trivial in XLA.
    out = h_n[:, -1, :] @ params["fc_w"] + params["fc_b"]
    return out, h_n, c_n


ealstm_model_forward = jax.jit(_ealstm_model_forward_impl)


def _orthogonal(key, rows, cols):
    """Rows-orthonormal matrix of shape (rows, cols), rows <= cols."""
    a = jax.random.normal(key, (cols, rows), dtype=jnp.float32)
    q, _ = jnp.linalg.qr(a)        # (cols, rows), orthonormal columns
    return q.T                     # (rows, cols), orthonormal rows


def make_params(key, input_size_dyn, input_size_stat, hidden_size,
                initial_forget_bias=5):
    k_ih, k_sh, k_fc = jax.random.split(key, 3)
    H = hidden_size
    w_ih = _orthogonal(k_ih, input_size_dyn, 3 * H)
    w_sh = _orthogonal(k_sh, input_size_stat, H)
    w_hh = jnp.tile(jnp.eye(H, dtype=jnp.float32), (1, 3))          # eye repeated x3
    bias = jnp.zeros((3 * H,), jnp.float32).at[:H].set(float(initial_forget_bias))
    bias_s = jnp.zeros((H,), jnp.float32)
    fc_w = (jax.random.uniform(k_fc, (H, 1), jnp.float32) - 0.5) * (2.0 / np.sqrt(H))
    fc_b = jnp.zeros((1,), jnp.float32)
    return {
        "w_ih": w_ih, "w_hh": w_hh, "w_sh": w_sh,
        "bias": bias.reshape(1, 3 * H), "bias_s": bias_s.reshape(1, H),
        "fc_w": fc_w, "fc_b": fc_b.reshape(1, 1),
    }


def reference_forward(x_d, x_s, params):
    """Pure-JAX reference mirroring the PyTorch forward."""
    H = params["w_sh"].shape[1]
    B = x_d.shape[0]
    i_gate = jax.nn.sigmoid(x_s @ params["w_sh"] + params["bias_s"])

    def step(carry, x_t):
        h0, c0 = carry
        gates = h0 @ params["w_hh"] + params["bias"] + x_t @ params["w_ih"]
        f, o, g = gates[:, :H], gates[:, H:2 * H], gates[:, 2 * H:]
        c1 = jax.nn.sigmoid(f) * c0 + i_gate * jnp.tanh(g)
        h1 = jax.nn.sigmoid(o) * jnp.tanh(c1)
        return (h1, c1), (h1, c1)

    h0 = jnp.zeros((B, H), jnp.float32)
    c0 = jnp.zeros((B, H), jnp.float32)
    (_, _), (h_seq, c_seq) = jax.lax.scan(step, (h0, c0),
                                          jnp.transpose(x_d, (1, 0, 2)))
    h_n = jnp.transpose(h_seq, (1, 0, 2))
    c_n = jnp.transpose(c_seq, (1, 0, 2))
    out = h_n[:, -1, :] @ params["fc_w"] + params["fc_b"]
    return out, h_n, c_n


if __name__ == "__main__":
    # Small, TPU-friendly shapes: batch=16 (exercises the 2-way megacore batch split),
    # seq=16, n_dyn=5 dynamic features, n_stat=7 static features, hidden=32.
    B, T, D, S, H = 16, 16, 5, 7, 32

    key = jax.random.PRNGKey(0)
    k_xd, k_xs, k_p = jax.random.split(key, 3)
    x_d = jax.random.normal(k_xd, (B, T, D), dtype=jnp.float32)
    x_s = jax.random.normal(k_xs, (B, S), dtype=jnp.float32)
    params = make_params(k_p, D, S, H, initial_forget_bias=5)

    out, h_n, c_n = ealstm_model_forward(x_d, x_s, params)
    jax.block_until_ready((out, h_n, c_n))

    out_r, h_r, c_r = reference_forward(x_d, x_s, params)
    np.testing.assert_allclose(np.asarray(h_n), np.asarray(h_r), rtol=1e-5, atol=1e-5)
    np.testing.assert_allclose(np.asarray(c_n), np.asarray(c_r), rtol=1e-5, atol=1e-5)
    np.testing.assert_allclose(np.asarray(out), np.asarray(out_r), rtol=1e-5, atol=1e-5)

    print("KERNEL_OK")
</pallas_src>

<mosaic_0001>
module attributes {stable_mosaic.version = 11 : i64} {
  func.func @ealstm_kernel(%arg0: i32, %arg1: memref<16x8x5xf32, #tpu.memory_space<vmem>>, %arg2: memref<8x7xf32, #tpu.memory_space<vmem>>, %arg3: memref<5x96xf32, #tpu.memory_space<vmem>>, %arg4: memref<32x96xf32, #tpu.memory_space<vmem>>, %arg5: memref<7x32xf32, #tpu.memory_space<vmem>>, %arg6: memref<1x96xf32, #tpu.memory_space<vmem>>, %arg7: memref<1x32xf32, #tpu.memory_space<vmem>>, %arg8: memref<16x8x32xf32, #tpu.memory_space<vmem>>, %arg9: memref<16x8x32xf32, #tpu.memory_space<vmem>>, %arg10: memref<128x96xf32, #tpu.memory_space<vmem>>) attributes {dimension_semantics = [#tpu.dimension_semantics<parallel>], iteration_bounds = array<i64: 2>, scalar_prefetch = 0 : i64, scratch_operands = 1 : i64, tpu.core_type = #tpu.core_type<tc>, window_params = [{transform_indices = @transform_0, window_bounds = array<i64: 16, 8, 5>}, {transform_indices = @transform_1, window_bounds = array<i64: 8, 7>}, {pipeline_mode = #tpu.pipeline_mode<synchronous>, transform_indices = @transform_2, window_bounds = array<i64: 5, 96>}, {pipeline_mode = #tpu.pipeline_mode<synchronous>, transform_indices = @transform_3, window_bounds = array<i64: 32, 96>}, {pipeline_mode = #tpu.pipeline_mode<synchronous>, transform_indices = @transform_4, window_bounds = array<i64: 7, 32>}, {pipeline_mode = #tpu.pipeline_mode<synchronous>, transform_indices = @transform_5, window_bounds = array<i64: 1, 96>}, {pipeline_mode = #tpu.pipeline_mode<synchronous>, transform_indices = @transform_6, window_bounds = array<i64: 1, 32>}, {transform_indices = @transform_7, window_bounds = array<i64: 16, 8, 32>}, {transform_indices = @transform_8, window_bounds = array<i64: 16, 8, 32>}]} {
    %c0 = arith.constant 0 : index
    %c0_0 = arith.constant 0 : index
    %0 = vector.load %arg2[%c0, %c0_0] : memref<8x7xf32, #tpu.memory_space<vmem>>, vector<8x7xf32>
    %c0_1 = arith.constant 0 : index
    %c0_2 = arith.constant 0 : index
    %1 = vector.load %arg5[%c0_1, %c0_2] : memref<7x32xf32, #tpu.memory_space<vmem>>, vector<7x32xf32>
    %cst = arith.constant dense<0.000000e+00> : vector<8x32xf32>
    %2 = tpu.matmul %0, %1, %cst {dimension_numbers = #tpu.dot_dimension_numbers<[1], [0], [0], [1], [0, 0, 1, 1], [], []>} : vector<8x7xf32>, vector<7x32xf32>, vector<8x32xf32> -> vector<8x32xf32>
    %c0_3 = arith.constant 0 : index
    %c0_4 = arith.constant 0 : index
    %3 = vector.load %arg7[%c0_3, %c0_4] : memref<1x32xf32, #tpu.memory_space<vmem>>, vector<1x32xf32>
    %4 = vector.broadcast %3 : vector<1x32xf32> to vector<8x32xf32>
    %5 = arith.addf %2, %4 : vector<8x32xf32>
    %6 = arith.negf %5 : vector<8x32xf32>
    %7 = math.exp %6 : vector<8x32xf32>
    %cst_5 = arith.constant 1.000000e+00 : f32
    %8 = vector.broadcast %cst_5 : f32 to vector<8x32xf32>
    %9 = arith.addf %8, %7 : vector<8x32xf32>
    %10 = arith.divf %8, %9 : vector<8x32xf32>
    %c0_6 = arith.constant 0 : index
    %c0_7 = arith.constant 0 : index
    %c0_8 = arith.constant 0 : index
    %11 = vector.load %arg1[%c0_6, %c0_7, %c0_8] : memref<16x8x5xf32, #tpu.memory_space<vmem>>, vector<16x8x5xf32>
    %12 = vector.shape_cast %11 : vector<16x8x5xf32> to vector<128x5xf32>
    %c0_9 = arith.constant 0 : index
    %c0_10 = arith.constant 0 : index
    %13 = vector.load %arg3[%c0_9, %c0_10] : memref<5x96xf32, #tpu.memory_space<vmem>>, vector<5x96xf32>
    %cst_11 = arith.constant dense<0.000000e+00> : vector<128x96xf32>
    %14 = tpu.matmul %12, %13, %cst_11 {dimension_numbers = #tpu.dot_dimension_numbers<[1], [0], [0], [1], [0, 0, 1, 1], [], []>} : vector<128x5xf32>, vector<5x96xf32>, vector<128x96xf32> -> vector<128x96xf32>
    %c0_12 = arith.constant 0 : index
    %c0_13 = arith.constant 0 : index
    %15 = vector.load %arg6[%c0_12, %c0_13] : memref<1x96xf32, #tpu.memory_space<vmem>>, vector<1x96xf32>
    %16 = vector.broadcast %15 : vector<1x96xf32> to vector<128x96xf32>
    %17 = arith.addf %14, %16 : vector<128x96xf32>
    %c0_14 = arith.constant 0 : index
    %c0_15 = arith.constant 0 : index
    %18 = vector.load %arg10[%c0_14, %c0_15] : memref<128x96xf32, #tpu.memory_space<vmem>>, vector<128x96xf32>
    tpu.vector_store %arg10[%c0_14, %c0_15], %17 {strides = array<i32>} : memref<128x96xf32, #tpu.memory_space<vmem>>, vector<128x96xf32>,
    %c0_16 = arith.constant 0 : index
    %c0_17 = arith.constant 0 : index
    %19 = vector.load %arg4[%c0_16, %c0_17] : memref<32x96xf32, #tpu.memory_space<vmem>>, vector<32x96xf32>
    %cst_18 = arith.constant 0.000000e+00 : f32
    %20 = vector.broadcast %cst_18 : f32 to vector<8x32xf32>
    %cst_19 = arith.constant 0.000000e+00 : f32
    %21 = vector.broadcast %cst_19 : f32 to vector<8x32xf32>
    %c0_i32 = arith.constant 0 : i32
    %c8_i32 = arith.constant 8 : i32
    %22 = arith.muli %c0_i32, %c8_i32 : i32
    %23 = tpu.assume_multiple %22, 8 : i32
    %cst_20 = arith.constant dense<0.000000e+00> : vector<8x96xf32>
    %24 = tpu.matmul %20, %19, %cst_20 {dimension_numbers = #tpu.dot_dimension_numbers<[1], [0], [0], [1], [0, 0, 1, 1], [], []>} : vector<8x32xf32>, vector<32x96xf32>, vector<8x96xf32> -> vector<8x96xf32>
    %25 = arith.index_cast %23 : i32 to index
    %c0_21 = arith.constant 0 : index
    %26 = vector.load %arg10[%25, %c0_21] : memref<128x96xf32, #tpu.memory_space<vmem>>, vector<8x96xf32>
    %27 = arith.addf %24, %26 : vector<8x96xf32>
    %28 = vector.extract_strided_slice %27 {offsets = [0, 0], sizes = [8, 64], strides = [1, 1]} : vector<8x96xf32> to vector<8x64xf32>
    %29 = arith.negf %28 : vector<8x64xf32>
    %30 = math.exp %29 : vector<8x64xf32>
    %cst_22 = arith.constant 1.000000e+00 : f32
    %31 = vector.broadcast %cst_22 : f32 to vector<8x64xf32>
    %32 = arith.addf %31, %30 : vector<8x64xf32>
    %33 = arith.divf %31, %32 : vector<8x64xf32>
    %34 = vector.extract_strided_slice %27 {offsets = [0, 64], sizes = [8, 32], strides = [1, 1]} : vector<8x96xf32> to vector<8x32xf32>
    %35 = math.tanh %34 : vector<8x32xf32>
    %36 = vector.extract_strided_slice %33 {offsets = [0, 0], sizes = [8, 32], strides = [1, 1]} : vector<8x64xf32> to vector<8x32xf32>
    %37 = arith.mulf %36, %21 : vector<8x32xf32>
    %38 = arith.mulf %10, %35 : vector<8x32xf32>
    %39 = arith.addf %37, %38 : vector<8x32xf32>
    %40 = vector.extract_strided_slice %33 {offsets = [0, 32], sizes = [8, 32], strides = [1, 1]} : vector<8x64xf32> to vector<8x32xf32>
    %41 = math.tanh %39 : vector<8x32xf32>
    %42 = arith.mulf %40, %41 : vector<8x32xf32>
    %43 = arith.index_cast %c0_i32 : i32 to index
    %c0_23 = arith.constant 0 : index
    %c0_24 = arith.constant 0 : index
    %44 = vector.load %arg8[%43, %c0_23, %c0_24] : memref<16x8x32xf32, #tpu.memory_space<vmem>>, vector<1x8x32xf32>
    %45 = vector.shape_cast %44 : vector<1x8x32xf32> to vector<8x32xf32>
    %46 = vector.shape_cast %42 : vector<8x32xf32> to vector<1x8x32xf32>
    tpu.vector_store %arg8[%43, %c0_23, %c0_24], %46 {strides = array<i32>} : memref<16x8x32xf32, #tpu.memory_space<vmem>>, vector<1x8x32xf32>,
    %47 = arith.index_cast %c0_i32 : i32 to index
    %c0_25 = arith.constant 0 : index
    %c0_26 = arith.constant 0 : index
    %48 = vector.load %arg9[%47, %c0_25, %c0_26] : memref<16x8x32xf32, #tpu.memory_space<vmem>>, vector<1x8x32xf32>
    %49 = vector.shape_cast %48 : vector<1x8x32xf32> to vector<8x32xf32>
    %50 = vector.shape_cast %39 : vector<8x32xf32> to vector<1x8x32xf32>
    tpu.vector_store %arg9[%47, %c0_25, %c0_26], %50 {strides = array<i32>} : memref<16x8x32xf32, #tpu.memory_space<vmem>>, vector<1x8x32xf32>,
    %c1_i32 = arith.constant 1 : i32
    %c8_i32_27 = arith.constant 8 : i32
    %51 = arith.muli %c1_i32, %c8_i32_27 : i32
    %52 = tpu.assume_multiple %51, 8 : i32
    %cst_28 = arith.constant dense<0.000000e+00> : vector<8x96xf32>
    %53 = tpu.matmul %42, %19, %cst_28 {dimension_numbers = #tpu.dot_dimension_numbers<[1], [0], [0], [1], [0, 0, 1, 1], [], []>} : vector<8x32xf32>, vector<32x96xf32>, vector<8x96xf32> -> vector<8x96xf32>
    %54 = arith.index_cast %52 : i32 to index
    %c0_29 = arith.constant 0 : index
    %55 = vector.load %arg10[%54, %c0_29] : memref<128x96xf32, #tpu.memory_space<vmem>>, vector<8x96xf32>
    %56 = arith.addf %53, %55 : vector<8x96xf32>
    %57 = vector.extract_strided_slice %56 {offsets = [0, 0], sizes = [8, 64], strides = [1, 1]} : vector<8x96xf32> to vector<8x64xf32>
    %58 = arith.negf %57 : vector<8x64xf32>
    %59 = math.exp %58 : vector<8x64xf32>
    %cst_30 = arith.constant 1.000000e+00 : f32
    %60 = vector.broadcast %cst_30 : f32 to vector<8x64xf32>
    %61 = arith.addf %60, %59 : vector<8x64xf32>
    %62 = arith.divf %60, %61 : vector<8x64xf32>
    %63 = vector.extract_strided_slice %56 {offsets = [0, 64], sizes = [8, 32], strides = [1, 1]} : vector<8x96xf32> to vector<8x32xf32>
    %64 = math.tanh %63 : vector<8x32xf32>
    %65 = vector.extract_strided_slice %62 {offsets = [0, 0], sizes = [8, 32], strides = [1, 1]} : vector<8x64xf32> to vector<8x32xf32>
    %66 = arith.mulf %65, %39 : vector<8x32xf32>
    %67 = arith.mulf %10, %64 : vector<8x32xf32>
    %68 = arith.addf %66, %67 : vector<8x32xf32>
    %69 = vector.extract_strided_slice %62 {offsets = [0, 32], sizes = [8, 32], strides = [1, 1]} : vector<8x64xf32> to vector<8x32xf32>
    %70 = math.tanh %68 : vector<8x32xf32>
    %71 = arith.mulf %69, %70 : vector<8x32xf32>
    %72 = arith.index_cast %c1_i32 : i32 to index
    %c0_31 = arith.constant 0 : index
    %c0_32 = arith.constant 0 : index
    %73 = vector.load %arg8[%72, %c0_31, %c0_32] : memref<16x8x32xf32, #tpu.memory_space<vmem>>, vector<1x8x32xf32>
    %74 = vector.shape_cast %73 : vector<1x8x32xf32> to vector<8x32xf32>
    %75 = vector.shape_cast %71 : vector<8x32xf32> to vector<1x8x32xf32>
    tpu.vector_store %arg8[%72, %c0_31, %c0_32], %75 {strides = array<i32>} : memref<16x8x32xf32, #tpu.memory_space<vmem>>, vector<1x8x32xf32>,
    %76 = arith.index_cast %c1_i32 : i32 to index
    %c0_33 = arith.constant 0 : index
    %c0_34 = arith.constant 0 : index
    %77 = vector.load %arg9[%76, %c0_33, %c0_34] : memref<16x8x32xf32, #tpu.memory_space<vmem>>, vector<1x8x32xf32>
    %78 = vector.shape_cast %77 : vector<1x8x32xf32> to vector<8x32xf32>
    %79 = vector.shape_cast %68 : vector<8x32xf32> to vector<1x8x32xf32>
    tpu.vector_store %arg9[%76, %c0_33, %c0_34], %79 {strides = array<i32>} : memref<16x8x32xf32, #tpu.memory_space<vmem>>, vector<1x8x32xf32>,
    %c2_i32 = arith.constant 2 : i32
    %c8_i32_35 = arith.constant 8 : i32
    %80 = arith.muli %c2_i32, %c8_i32_35 : i32
    %81 = tpu.assume_multiple %80, 8 : i32
    %cst_36 = arith.constant dense<0.000000e+00> : vector<8x96xf32>
    %82 = tpu.matmul %71, %19, %cst_36 {dimension_numbers = #tpu.dot_dimension_numbers<[1], [0], [0], [1], [0, 0, 1, 1], [], []>} : vector<8x32xf32>, vector<32x96xf32>, vector<8x96xf32> -> vector<8x96xf32>
    %83 = arith.index_cast %81 : i32 to index
    %c0_37 = arith.constant 0 : index
    %84 = vector.load %arg10[%83, %c0_37] : memref<128x96xf32, #tpu.memory_space<vmem>>, vector<8x96xf32>
    %85 = arith.addf %82, %84 : vector<8x96xf32>
    %86 = vector.extract_strided_slice %85 {offsets = [0, 0], sizes = [8, 64], strides = [1, 1]} : vector<8x96xf32> to vector<8x64xf32>
    %87 = arith.negf %86 : vector<8x64xf32>
    %88 = math.exp %87 : vector<8x64xf32>
    %cst_38 = arith.constant 1.000000e+00 : f32
    %89 = vector.broadcast %cst_38 : f32 to vector<8x64xf32>
    %90 = arith.addf %89, %88 : vector<8x64xf32>
    %91 = arith.divf %89, %90 : vector<8x64xf32>
    %92 = vector.extract_strided_slice %85 {offsets = [0, 64], sizes = [8, 32], strides = [1, 1]} : vector<8x96xf32> to vector<8x32xf32>
    %93 = math.tanh %92 : vector<8x32xf32>
    %94 = vector.extract_strided_slice %91 {offsets = [0, 0], sizes = [8, 32], strides = [1, 1]} : vector<8x64xf32> to vector<8x32xf32>
    %95 = arith.mulf %94, %68 : vector<8x32xf32>
    %96 = arith.mulf %10, %93 : vector<8x32xf32>
    %97 = arith.addf %95, %96 : vector<8x32xf32>
    %98 = vector.extract_strided_slice %91 {offsets = [0, 32], sizes = [8, 32], strides = [1, 1]} : vector<8x64xf32> to vector<8x32xf32>
    %99 = math.tanh %97 : vector<8x32xf32>
    %100 = arith.mulf %98, %99 : vector<8x32xf32>
    %101 = arith.index_cast %c2_i32 : i32 to index
    %c0_39 = arith.constant 0 : index
    %c0_40 = arith.constant 0 : index
    %102 = vector.load %arg8[%101, %c0_39, %c0_40] : memref<16x8x32xf32, #tpu.memory_space<vmem>>, vector<1x8x32xf32>
    %103 = vector.shape_cast %102 : vector<1x8x32xf32> to vector<8x32xf32>
    %104 = vector.shape_cast %100 : vector<8x32xf32> to vector<1x8x32xf32>
    tpu.vector_store %arg8[%101, %c0_39, %c0_40], %104 {strides = array<i32>} : memref<16x8x32xf32, #tpu.memory_space<vmem>>, vector<1x8x32xf32>,
    %105 = arith.index_cast %c2_i32 : i32 to index
    %c0_41 = arith.constant 0 : index
    %c0_42 = arith.constant 0 : index
    %106 = vector.load %arg9[%105, %c0_41, %c0_42] : memref<16x8x32xf32, #tpu.memory_space<vmem>>, vector<1x8x32xf32>
    %107 = vector.shape_cast %106 : vector<1x8x32xf32> to vector<8x32xf32>
    %108 = vector.shape_cast %97 : vector<8x32xf32> to vector<1x8x32xf32>
    tpu.vector_store %arg9[%105, %c0_41, %c0_42], %108 {strides = array<i32>} : memref<16x8x32xf32, #tpu.memory_space<vmem>>, vector<1x8x32xf32>,
    %c3_i32 = arith.constant 3 : i32
    %c8_i32_43 = arith.constant 8 : i32
    %109 = arith.muli %c3_i32, %c8_i32_43 : i32
    %110 = tpu.assume_multiple %109, 8 : i32
    %cst_44 = arith.constant dense<0.000000e+00> : vector<8x96xf32>
    %111 = tpu.matmul %100, %19, %cst_44 {dimension_numbers = #tpu.dot_dimension_numbers<[1], [0], [0], [1], [0, 0, 1, 1], [], []>} : vector<8x32xf32>, vector<32x96xf32>, vector<8x96xf32> -> vector<8x96xf32>
    %112 = arith.index_cast %110 : i32 to index
    %c0_45 = arith.constant 0 : index
    %113 = vector.load %arg10[%112, %c0_45] : memref<128x96xf32, #tpu.memory_space<vmem>>, vector<8x96xf32>
    %114 = arith.addf %111, %113 : vector<8x96xf32>
    %115 = vector.extract_strided_slice %114 {offsets = [0, 0], sizes = [8, 64], strides = [1, 1]} : vector<8x96xf32> to vector<8x64xf32>
    %116 = arith.negf %115 : vector<8x64xf32>
    %117 = math.exp %116 : vector<8x64xf32>
    %cst_46 = arith.constant 1.000000e+00 : f32
    %118 = vector.broadcast %cst_46 : f32 to vector<8x64xf32>
    %119 = arith.addf %118, %117 : vector<8x64xf32>
    %120 = arith.divf %118, %119 : vector<8x64xf32>
    %121 = vector.extract_strided_slice %114 {offsets = [0, 64], sizes = [8, 32], strides = [1, 1]} : vector<8x96xf32> to vector<8x32xf32>
    %122 = math.tanh %121 : vector<8x32xf32>
    %123 = vector.extract_strided_slice %120 {offsets = [0, 0], sizes = [8, 32], strides = [1, 1]} : vector<8x64xf32> to vector<8x32xf32>
    %124 = arith.mulf %123, %97 : vector<8x32xf32>
    %125 = arith.mulf %10, %122 : vector<8x32xf32>
    %126 = arith.addf %124, %125 : vector<8x32xf32>
    %127 = vector.extract_strided_slice %120 {offsets = [0, 32], sizes = [8, 32], strides = [1, 1]} : vector<8x64xf32> to vector<8x32xf32>
    %128 = math.tanh %126 : vector<8x32xf32>
    %129 = arith.mulf %127, %128 : vector<8x32xf32>
    %130 = arith.index_cast %c3_i32 : i32 to index
    %c0_47 = arith.constant 0 : index
    %c0_48 = arith.constant 0 : index
    %131 = vector.load %arg8[%130, %c0_47, %c0_48] : memref<16x8x32xf32, #tpu.memory_space<vmem>>, vector<1x8x32xf32>
    %132 = vector.shape_cast %131 : vector<1x8x32xf32> to vector<8x32xf32>
    %133 = vector.shape_cast %129 : vector<8x32xf32> to vector<1x8x32xf32>
    tpu.vector_store %arg8[%130, %c0_47, %c0_48], %133 {strides = array<i32>} : memref<16x8x32xf32, #tpu.memory_space<vmem>>, vector<1x8x32xf32>,
    %134 = arith.index_cast %c3_i32 : i32 to index
    %c0_49 = arith.constant 0 : index
    %c0_50 = arith.constant 0 : index
    %135 = vector.load %arg9[%134, %c0_49, %c0_50] : memref<16x8x32xf32, #tpu.memory_space<vmem>>, vector<1x8x32xf32>
    %136 = vector.shape_cast %135 : vector<1x8x32xf32> to vector<8x32xf32>
    %137 = vector.shape_cast %126 : vector<8x32xf32> to vector<1x8x32xf32>
    tpu.vector_store %arg9[%134, %c0_49, %c0_50], %137 {strides = array<i32>} : memref<16x8x32xf32, #tpu.memory_space<vmem>>, vector<1x8x32xf32>,
    %c4_i32 = arith.constant 4 : i32
    %c8_i32_51 = arith.constant 8 : i32
    %138 = arith.muli %c4_i32, %c8_i32_51 : i32
    %139 = tpu.assume_multiple %138, 8 : i32
    %cst_52 = arith.constant dense<0.000000e+00> : vector<8x96xf32>
    %140 = tpu.matmul %129, %19, %cst_52 {dimension_numbers = #tpu.dot_dimension_numbers<[1], [0], [0], [1], [0, 0, 1, 1], [], []>} : vector<8x32xf32>, vector<32x96xf32>, vector<8x96xf32> -> vector<8x96xf32>
    %141 = arith.index_cast %139 : i32 to index
    %c0_53 = arith.constant 0 : index
    %142 = vector.load %arg10[%141, %c0_53] : memref<128x96xf32, #tpu.memory_space<vmem>>, vector<8x96xf32>
    %143 = arith.addf %140, %142 : vector<8x96xf32>
    %144 = vector.extract_strided_slice %143 {offsets = [0, 0], sizes = [8, 64], strides = [1, 1]} : vector<8x96xf32> to vector<8x64xf32>
    %145 = arith.negf %144 : vector<8x64xf32>
    %146 = math.exp %145 : vector<8x64xf32>
    %cst_54 = arith.constant 1.000000e+00 : f32
    %147 = vector.broadcast %cst_54 : f32 to vector<8x64xf32>
    %148 = arith.addf %147, %146 : vector<8x64xf32>
    %149 = arith.divf %147, %148 : vector<8x64xf32>
    %150 = vector.extract_strided_slice %143 {offsets = [0, 64], sizes = [8, 32], strides = [1, 1]} : vector<8x96xf32> to vector<8x32xf32>
    %151 = math.tanh %150 : vector<8x32xf32>
    %152 = vector.extract_strided_slice %149 {offsets = [0, 0], sizes = [8, 32], strides = [1, 1]} : vector<8x64xf32> to vector<8x32xf32>
    %153 = arith.mulf %152, %126 : vector<8x32xf32>
    %154 = arith.mulf %10, %151 : vector<8x32xf32>
    %155 = arith.addf %153, %154 : vector<8x32xf32>
    %156 = vector.extract_strided_slice %149 {offsets = [0, 32], sizes = [8, 32], strides = [1, 1]} : vector<8x64xf32> to vector<8x32xf32>
    %157 = math.tanh %155 : vector<8x32xf32>
    %158 = arith.mulf %156, %157 : vector<8x32xf32>
    %159 = arith.index_cast %c4_i32 : i32 to index
    %c0_55 = arith.constant 0 : index
    %c0_56 = arith.constant 0 : index
    %160 = vector.load %arg8[%159, %c0_55, %c0_56] : memref<16x8x32xf32, #tpu.memory_space<vmem>>, vector<1x8x32xf32>
    %161 = vector.shape_cast %160 : vector<1x8x32xf32> to vector<8x32xf32>
    %162 = vector.shape_cast %158 : vector<8x32xf32> to vector<1x8x32xf32>
    tpu.vector_store %arg8[%159, %c0_55, %c0_56], %162 {strides = array<i32>} : memref<16x8x32xf32, #tpu.memory_space<vmem>>, vector<1x8x32xf32>,
    %163 = arith.index_cast %c4_i32 : i32 to index
    %c0_57 = arith.constant 0 : index
    %c0_58 = arith.constant 0 : index
    %164 = vector.load %arg9[%163, %c0_57, %c0_58] : memref<16x8x32xf32, #tpu.memory_space<vmem>>, vector<1x8x32xf32>
    %165 = vector.shape_cast %164 : vector<1x8x32xf32> to vector<8x32xf32>
    %166 = vector.shape_cast %155 : vector<8x32xf32> to vector<1x8x32xf32>
    tpu.vector_store %arg9[%163, %c0_57, %c0_58], %166 {strides = array<i32>} : memref<16x8x32xf32, #tpu.memory_space<vmem>>, vector<1x8x32xf32>,
    %c5_i32 = arith.constant 5 : i32
    %c8_i32_59 = arith.constant 8 : i32
    %167 = arith.muli %c5_i32, %c8_i32_59 : i32
    %168 = tpu.assume_multiple %167, 8 : i32
    %cst_60 = arith.constant dense<0.000000e+00> : vector<8x96xf32>
    %169 = tpu.matmul %158, %19, %cst_60 {dimension_numbers = #tpu.dot_dimension_numbers<[1], [0], [0], [1], [0, 0, 1, 1], [], []>} : vector<8x32xf32>, vector<32x96xf32>, vector<8x96xf32> -> vector<8x96xf32>
    %170 = arith.index_cast %168 : i32 to index
    %c0_61 = arith.constant 0 : index
    %171 = vector.load %arg10[%170, %c0_61] : memref<128x96xf32, #tpu.memory_space<vmem>>, vector<8x96xf32>
    %172 = arith.addf %169, %171 : vector<8x96xf32>
    %173 = vector.extract_strided_slice %172 {offsets = [0, 0], sizes = [8, 64], strides = [1, 1]} : vector<8x96xf32> to vector<8x64xf32>
    %174 = arith.negf %173 : vector<8x64xf32>
    %175 = math.exp %174 : vector<8x64xf32>
    %cst_62 = arith.constant 1.000000e+00 : f32
    %176 = vector.broadcast %cst_62 : f32 to vector<8x64xf32>
    %177 = arith.addf %176, %175 : vector<8x64xf32>
    %178 = arith.divf %176, %177 : vector<8x64xf32>
    %179 = vector.extract_strided_slice %172 {offsets = [0, 64], sizes = [8, 32], strides = [1, 1]} : vector<8x96xf32> to vector<8x32xf32>
    %180 = math.tanh %179 : vector<8x32xf32>
    %181 = vector.extract_strided_slice %178 {offsets = [0, 0], sizes = [8, 32], strides = [1, 1]} : vector<8x64xf32> to vector<8x32xf32>
    %182 = arith.mulf %181, %155 : vector<8x32xf32>
    %183 = arith.mulf %10, %180 : vector<8x32xf32>
    %184 = arith.addf %182, %183 : vector<8x32xf32>
    %185 = vector.extract_strided_slice %178 {offsets = [0, 32], sizes = [8, 32], strides = [1, 1]} : vector<8x64xf32> to vector<8x32xf32>
    %186 = math.tanh %184 : vector<8x32xf32>
    %187 = arith.mulf %185, %186 : vector<8x32xf32>
    %188 = arith.index_cast %c5_i32 : i32 to index
    %c0_63 = arith.constant 0 : index
    %c0_64 = arith.constant 0 : index
    %189 = vector.load %arg8[%188, %c0_63, %c0_64] : memref<16x8x32xf32, #tpu.memory_space<vmem>>, vector<1x8x32xf32>
    %190 = vector.shape_cast %189 : vector<1x8x32xf32> to vector<8x32xf32>
    %191 = vector.shape_cast %187 : vector<8x32xf32> to vector<1x8x32xf32>
    tpu.vector_store %arg8[%188, %c0_63, %c0_64], %191 {strides = array<i32>} : memref<16x8x32xf32, #tpu.memory_space<vmem>>, vector<1x8x32xf32>,
    %192 = arith.index_cast %c5_i32 : i32 to index
    %c0_65 = arith.constant 0 : index
    %c0_66 = arith.constant 0 : index
    %193 = vector.load %arg9[%192, %c0_65, %c0_66] : memref<16x8x32xf32, #tpu.memory_space<vmem>>, vector<1x8x32xf32>
    %194 = vector.shape_cast %193 : vector<1x8x32xf32> to vector<8x32xf32>
    %195 = vector.shape_cast %184 : vector<8x32xf32> to vector<1x8x32xf32>
    tpu.vector_store %arg9[%192, %c0_65, %c0_66], %195 {strides = array<i32>} : memref<16x8x32xf32, #tpu.memory_space<vmem>>, vector<1x8x32xf32>,
    %c6_i32 = arith.constant 6 : i32
    %c8_i32_67 = arith.constant 8 : i32
    %196 = arith.muli %c6_i32, %c8_i32_67 : i32
    %197 = tpu.assume_multiple %196, 8 : i32
    %cst_68 = arith.constant dense<0.000000e+00> : vector<8x96xf32>
    %198 = tpu.matmul %187, %19, %cst_68 {dimension_numbers = #tpu.dot_dimension_numbers<[1], [0], [0], [1], [0, 0, 1, 1], [], []>} : vector<8x32xf32>, vector<32x96xf32>, vector<8x96xf32> -> vector<8x96xf32>
    %199 = arith.index_cast %197 : i32 to index
    %c0_69 = arith.constant 0 : index
    %200 = vector.load %arg10[%199, %c0_69] : memref<128x96xf32, #tpu.memory_space<vmem>>, vector<8x96xf32>
    %201 = arith.addf %198, %200 : vector<8x96xf32>
    %202 = vector.extract_strided_slice %201 {offsets = [0, 0], sizes = [8, 64], strides = [1, 1]} : vector<8x96xf32> to vector<8x64xf32>
    %203 = arith.negf %202 : vector<8x64xf32>
    %204 = math.exp %203 : vector<8x64xf32>
    %cst_70 = arith.constant 1.000000e+00 : f32
    %205 = vector.broadcast %cst_70 : f32 to vector<8x64xf32>
    %206 = arith.addf %205, %204 : vector<8x64xf32>
    %207 = arith.divf %205, %206 : vector<8x64xf32>
    %208 = vector.extract_strided_slice %201 {offsets = [0, 64], sizes = [8, 32], strides = [1, 1]} : vector<8x96xf32> to vector<8x32xf32>
    %209 = math.tanh %208 : vector<8x32xf32>
    %210 = vector.extract_strided_slice %207 {offsets = [0, 0], sizes = [8, 32], strides = [1, 1]} : vector<8x64xf32> to vector<8x32xf32>
    %211 = arith.mulf %210, %184 : vector<8x32xf32>
    %212 = arith.mulf %10, %209 : vector<8x32xf32>
    %213 = arith.addf %211, %212 : vector<8x32xf32>
    %214 = vector.extract_strided_slice %207 {offsets = [0, 32], sizes = [8, 32], strides = [1, 1]} : vector<8x64xf32> to vector<8x32xf32>
    %215 = math.tanh %213 : vector<8x32xf32>
    %216 = arith.mulf %214, %215 : vector<8x32xf32>
    %217 = arith.index_cast %c6_i32 : i32 to index
    %c0_71 = arith.constant 0 : index
    %c0_72 = arith.constant 0 : index
    %218 = vector.load %arg8[%217, %c0_71, %c0_72] : memref<16x8x32xf32, #tpu.memory_space<vmem>>, vector<1x8x32xf32>
    %219 = vector.shape_cast %218 : vector<1x8x32xf32> to vector<8x32xf32>
    %220 = vector.shape_cast %216 : vector<8x32xf32> to vector<1x8x32xf32>
    tpu.vector_store %arg8[%217, %c0_71, %c0_72], %220 {strides = array<i32>} : memref<16x8x32xf32, #tpu.memory_space<vmem>>, vector<1x8x32xf32>,
    %221 = arith.index_cast %c6_i32 : i32 to index
    %c0_73 = arith.constant 0 : index
    %c0_74 = arith.constant 0 : index
    %222 = vector.load %arg9[%221, %c0_73, %c0_74] : memref<16x8x32xf32, #tpu.memory_space<vmem>>, vector<1x8x32xf32>
    %223 = vector.shape_cast %222 : vector<1x8x32xf32> to vector<8x32xf32>
    %224 = vector.shape_cast %213 : vector<8x32xf32> to vector<1x8x32xf32>
    tpu.vector_store %arg9[%221, %c0_73, %c0_74], %224 {strides = array<i32>} : memref<16x8x32xf32, #tpu.memory_space<vmem>>, vector<1x8x32xf32>,
    %c7_i32 = arith.constant 7 : i32
    %c8_i32_75 = arith.constant 8 : i32
    %225 = arith.muli %c7_i32, %c8_i32_75 : i32
    %226 = tpu.assume_multiple %225, 8 : i32
    %cst_76 = arith.constant dense<0.000000e+00> : vector<8x96xf32>
    %227 = tpu.matmul %216, %19, %cst_76 {dimension_numbers = #tpu.dot_dimension_numbers<[1], [0], [0], [1], [0, 0, 1, 1], [], []>} : vector<8x32xf32>, vector<32x96xf32>, vector<8x96xf32> -> vector<8x96xf32>
    %228 = arith.index_cast %226 : i32 to index
    %c0_77 = arith.constant 0 : index
    %229 = vector.load %arg10[%228, %c0_77] : memref<128x96xf32, #tpu.memory_space<vmem>>, vector<8x96xf32>
    %230 = arith.addf %227, %229 : vector<8x96xf32>
    %231 = vector.extract_strided_slice %230 {offsets = [0, 0], sizes = [8, 64], strides = [1, 1]} : vector<8x96xf32> to vector<8x64xf32>
    %232 = arith.negf %231 : vector<8x64xf32>
    %233 = math.exp %232 : vector<8x64xf32>
    %cst_78 = arith.constant 1.000000e+00 : f32
    %234 = vector.broadcast %cst_78 : f32 to vector<8x64xf32>
    %235 = arith.addf %234, %233 : vector<8x64xf32>
    %236 = arith.divf %234, %235 : vector<8x64xf32>
    %237 = vector.extract_strided_slice %230 {offsets = [0, 64], sizes = [8, 32], strides = [1, 1]} : vector<8x96xf32> to vector<8x32xf32>
    %238 = math.tanh %237 : vector<8x32xf32>
    %239 = vector.extract_strided_slice %236 {offsets = [0, 0], sizes = [8, 32], strides = [1, 1]} : vector<8x64xf32> to vector<8x32xf32>
    %240 = arith.mulf %239, %213 : vector<8x32xf32>
    %241 = arith.mulf %10, %238 : vector<8x32xf32>
    %242 = arith.addf %240, %241 : vector<8x32xf32>
    %243 = vector.extract_strided_slice %236 {offsets = [0, 32], sizes = [8, 32], strides = [1, 1]} : vector<8x64xf32> to vector<8x32xf32>
    %244 = math.tanh %242 : vector<8x32xf32>
    %245 = arith.mulf %243, %244 : vector<8x32xf32>
    %246 = arith.index_cast %c7_i32 : i32 to index
    %c0_79 = arith.constant 0 : index
    %c0_80 = arith.constant 0 : index
    %247 = vector.load %arg8[%246, %c0_79, %c0_80] : memref<16x8x32xf32, #tpu.memory_space<vmem>>, vector<1x8x32xf32>
    %248 = vector.shape_cast %247 : vector<1x8x32xf32> to vector<8x32xf32>
    %249 = vector.shape_cast %245 : vector<8x32xf32> to vector<1x8x32xf32>
    tpu.vector_store %arg8[%246, %c0_79, %c0_80], %249 {strides = array<i32>} : memref<16x8x32xf32, #tpu.memory_space<vmem>>, vector<1x8x32xf32>,
    %250 = arith.index_cast %c7_i32 : i32 to index
    %c0_81 = arith.constant 0 : index
    %c0_82 = arith.constant 0 : index
    %251 = vector.load %arg9[%250, %c0_81, %c0_82] : memref<16x8x32xf32, #tpu.memory_space<vmem>>, vector<1x8x32xf32>
    %252 = vector.shape_cast %251 : vector<1x8x32xf32> to vector<8x32xf32>
    %253 = vector.shape_cast %242 : vector<8x32xf32> to vector<1x8x32xf32>
    tpu.vector_store %arg9[%250, %c0_81, %c0_82], %253 {strides = array<i32>} : memref<16x8x32xf32, #tpu.memory_space<vmem>>, vector<1x8x32xf32>,
    %c8_i32_83 = arith.constant 8 : i32
    %c8_i32_84 = arith.constant 8 : i32
    %254 = arith.muli %c8_i32_83, %c8_i32_84 : i32
    %255 = tpu.assume_multiple %254, 8 : i32
    %cst_85 = arith.constant dense<0.000000e+00> : vector<8x96xf32>
    %256 = tpu.matmul %245, %19, %cst_85 {dimension_numbers = #tpu.dot_dimension_numbers<[1], [0], [0], [1], [0, 0, 1, 1], [], []>} : vector<8x32xf32>, vector<32x96xf32>, vector<8x96xf32> -> vector<8x96xf32>
    %257 = arith.index_cast %255 : i32 to index
    %c0_86 = arith.constant 0 : index
    %258 = vector.load %arg10[%257, %c0_86] : memref<128x96xf32, #tpu.memory_space<vmem>>, vector<8x96xf32>
    %259 = arith.addf %256, %258 : vector<8x96xf32>
    %260 = vector.extract_strided_slice %259 {offsets = [0, 0], sizes = [8, 64], strides = [1, 1]} : vector<8x96xf32> to vector<8x64xf32>
    %261 = arith.negf %260 : vector<8x64xf32>
    %262 = math.exp %261 : vector<8x64xf32>
    %cst_87 = arith.constant 1.000000e+00 : f32
    %263 = vector.broadcast %cst_87 : f32 to vector<8x64xf32>
    %264 = arith.addf %263, %262 : vector<8x64xf32>
    %265 = arith.divf %263, %264 : vector<8x64xf32>
    %266 = vector.extract_strided_slice %259 {offsets = [0, 64], sizes = [8, 32], strides = [1, 1]} : vector<8x96xf32> to vector<8x32xf32>
    %267 = math.tanh %266 : vector<8x32xf32>
    %268 = vector.extract_strided_slice %265 {offsets = [0, 0], sizes = [8, 32], strides = [1, 1]} : vector<8x64xf32> to vector<8x32xf32>
    %269 = arith.mulf %268, %242 : vector<8x32xf32>
    %270 = arith.mulf %10, %267 : vector<8x32xf32>
    %271 = arith.addf %269, %270 : vector<8x32xf32>
    %272 = vector.extract_strided_slice %265 {offsets = [0, 32], sizes = [8, 32], strides = [1, 1]} : vector<8x64xf32> to vector<8x32xf32>
    %273 = math.tanh %271 : vector<8x32xf32>
    %274 = arith.mulf %272, %273 : vector<8x32xf32>
    %275 = arith.index_cast %c8_i32_83 : i32 to index
    %c0_88 = arith.constant 0 : index
    %c0_89 = arith.constant 0 : index
    %276 = vector.load %arg8[%275, %c0_88, %c0_89] : memref<16x8x32xf32, #tpu.memory_space<vmem>>, vector<1x8x32xf32>
    %277 = vector.shape_cast %276 : vector<1x8x32xf32> to vector<8x32xf32>
    %278 = vector.shape_cast %274 : vector<8x32xf32> to vector<1x8x32xf32>
    tpu.vector_store %arg8[%275, %c0_88, %c0_89], %278 {strides = array<i32>} : memref<16x8x32xf32, #tpu.memory_space<vmem>>, vector<1x8x32xf32>,
    %279 = arith.index_cast %c8_i32_83 : i32 to index
    %c0_90 = arith.constant 0 : index
    %c0_91 = arith.constant 0 : index
    %280 = vector.load %arg9[%279, %c0_90, %c0_91] : memref<16x8x32xf32, #tpu.memory_space<vmem>>, vector<1x8x32xf32>
    %281 = vector.shape_cast %280 : vector<1x8x32xf32> to vector<8x32xf32>
    %282 = vector.shape_cast %271 : vector<8x32xf32> to vector<1x8x32xf32>
    tpu.vector_store %arg9[%279, %c0_90, %c0_91], %282 {strides = array<i32>} : memref<16x8x32xf32, #tpu.memory_space<vmem>>, vector<1x8x32xf32>,
    %c9_i32 = arith.constant 9 : i32
    %c8_i32_92 = arith.constant 8 : i32
    %283 = arith.muli %c9_i32, %c8_i32_92 : i32
    %284 = tpu.assume_multiple %283, 8 : i32
    %cst_93 = arith.constant dense<0.000000e+00> : vector<8x96xf32>
    %285 = tpu.matmul %274, %19, %cst_93 {dimension_numbers = #tpu.dot_dimension_numbers<[1], [0], [0], [1], [0, 0, 1, 1], [], []>} : vector<8x32xf32>, vector<32x96xf32>, vector<8x96xf32> -> vector<8x96xf32>
    %286 = arith.index_cast %284 : i32 to index
    %c0_94 = arith.constant 0 : index
    %287 = vector.load %arg10[%286, %c0_94] : memref<128x96xf32, #tpu.memory_space<vmem>>, vector<8x96xf32>
    %288 = arith.addf %285, %287 : vector<8x96xf32>
    %289 = vector.extract_strided_slice %288 {offsets = [0, 0], sizes = [8, 64], strides = [1, 1]} : vector<8x96xf32> to vector<8x64xf32>
    %290 = arith.negf %289 : vector<8x64xf32>
    %291 = math.exp %290 : vector<8x64xf32>
    %cst_95 = arith.constant 1.000000e+00 : f32
    %292 = vector.broadcast %cst_95 : f32 to vector<8x64xf32>
    %293 = arith.addf %292, %291 : vector<8x64xf32>
    %294 = arith.divf %292, %293 : vector<8x64xf32>
    %295 = vector.extract_strided_slice %288 {offsets = [0, 64], sizes = [8, 32], strides = [1, 1]} : vector<8x96xf32> to vector<8x32xf32>
    %296 = math.tanh %295 : vector<8x32xf32>
    %297 = vector.extract_strided_slice %294 {offsets = [0, 0], sizes = [8, 32], strides = [1, 1]} : vector<8x64xf32> to vector<8x32xf32>
    %298 = arith.mulf %297, %271 : vector<8x32xf32>
    %299 = arith.mulf %10, %296 : vector<8x32xf32>
    %300 = arith.addf %298, %299 : vector<8x32xf32>
    %301 = vector.extract_strided_slice %294 {offsets = [0, 32], sizes = [8, 32], strides = [1, 1]} : vector<8x64xf32> to vector<8x32xf32>
    %302 = math.tanh %300 : vector<8x32xf32>
    %303 = arith.mulf %301, %302 : vector<8x32xf32>
    %304 = arith.index_cast %c9_i32 : i32 to index
    %c0_96 = arith.constant 0 : index
    %c0_97 = arith.constant 0 : index
    %305 = vector.load %arg8[%304, %c0_96, %c0_97] : memref<16x8x32xf32, #tpu.memory_space<vmem>>, vector<1x8x32xf32>
    %306 = vector.shape_cast %305 : vector<1x8x32xf32> to vector<8x32xf32>
    %307 = vector.shape_cast %303 : vector<8x32xf32> to vector<1x8x32xf32>
    tpu.vector_store %arg8[%304, %c0_96, %c0_97], %307 {strides = array<i32>} : memref<16x8x32xf32, #tpu.memory_space<vmem>>, vector<1x8x32xf32>,
    %308 = arith.index_cast %c9_i32 : i32 to index
    %c0_98 = arith.constant 0 : index
    %c0_99 = arith.constant 0 : index
    %309 = vector.load %arg9[%308, %c0_98, %c0_99] : memref<16x8x32xf32, #tpu.memory_space<vmem>>, vector<1x8x32xf32>
    %310 = vector.shape_cast %309 : vector<1x8x32xf32> to vector<8x32xf32>
    %311 = vector.shape_cast %300 : vector<8x32xf32> to vector<1x8x32xf32>
    tpu.vector_store %arg9[%308, %c0_98, %c0_99], %311 {strides = array<i32>} : memref<16x8x32xf32, #tpu.memory_space<vmem>>, vector<1x8x32xf32>,
    %c10_i32 = arith.constant 10 : i32
    %c8_i32_100 = arith.constant 8 : i32
    %312 = arith.muli %c10_i32, %c8_i32_100 : i32
    %313 = tpu.assume_multiple %312, 8 : i32
    %cst_101 = arith.constant dense<0.000000e+00> : vector<8x96xf32>
    %314 = tpu.matmul %303, %19, %cst_101 {dimension_numbers = #tpu.dot_dimension_numbers<[1], [0], [0], [1], [0, 0, 1, 1], [], []>} : vector<8x32xf32>, vector<32x96xf32>, vector<8x96xf32> -> vector<8x96xf32>
    %315 = arith.index_cast %313 : i32 to index
    %c0_102 = arith.constant 0 : index
    %316 = vector.load %arg10[%315, %c0_102] : memref<128x96xf32, #tpu.memory_space<vmem>>, vector<8x96xf32>
    %317 = arith.addf %314, %316 : vector<8x96xf32>
    %318 = vector.extract_strided_slice %317 {offsets = [0, 0], sizes = [8, 64], strides = [1, 1]} : vector<8x96xf32> to vector<8x64xf32>
    %319 = arith.negf %318 : vector<8x64xf32>
    %320 = math.exp %319 : vector<8x64xf32>
    %cst_103 = arith.constant 1.000000e+00 : f32
    %321 = vector.broadcast %cst_103 : f32 to vector<8x64xf32>
    %322 = arith.addf %321, %320 : vector<8x64xf32>
    %323 = arith.divf %321, %322 : vector<8x64xf32>
    %324 = vector.extract_strided_slice %317 {offsets = [0, 64], sizes = [8, 32], strides = [1, 1]} : vector<8x96xf32> to vector<8x32xf32>
    %325 = math.tanh %324 : vector<8x32xf32>
    %326 = vector.extract_strided_slice %323 {offsets = [0, 0], sizes = [8, 32], strides = [1, 1]} : vector<8x64xf32> to vector<8x32xf32>
    %327 = arith.mulf %326, %300 : vector<8x32xf32>
    %328 = arith.mulf %10, %325 : vector<8x32xf32>
    %329 = arith.addf %327, %328 : vector<8x32xf32>
    %330 = vector.extract_strided_slice %323 {offsets = [0, 32], sizes = [8, 32], strides = [1, 1]} : vector<8x64xf32> to vector<8x32xf32>
    %331 = math.tanh %329 : vector<8x32xf32>
    %332 = arith.mulf %330, %331 : vector<8x32xf32>
    %333 = arith.index_cast %c10_i32 : i32 to index
    %c0_104 = arith.constant 0 : index
    %c0_105 = arith.constant 0 : index
    %334 = vector.load %arg8[%333, %c0_104, %c0_105] : memref<16x8x32xf32, #tpu.memory_space<vmem>>, vector<1x8x32xf32>
    %335 = vector.shape_cast %334 : vector<1x8x32xf32> to vector<8x32xf32>
    %336 = vector.shape_cast %332 : vector<8x32xf32> to vector<1x8x32xf32>
    tpu.vector_store %arg8[%333, %c0_104, %c0_105], %336 {strides = array<i32>} : memref<16x8x32xf32, #tpu.memory_space<vmem>>, vector<1x8x32xf32>,
    %337 = arith.index_cast %c10_i32 : i32 to index
    %c0_106 = arith.constant 0 : index
    %c0_107 = arith.constant 0 : index
    %338 = vector.load %arg9[%337, %c0_106, %c0_107] : memref<16x8x32xf32, #tpu.memory_space<vmem>>, vector<1x8x32xf32>
    %339 = vector.shape_cast %338 : vector<1x8x32xf32> to vector<8x32xf32>
    %340 = vector.shape_cast %329 : vector<8x32xf32> to vector<1x8x32xf32>
    tpu.vector_store %arg9[%337, %c0_106, %c0_107], %340 {strides = array<i32>} : memref<16x8x32xf32, #tpu.memory_space<vmem>>, vector<1x8x32xf32>,
    %c11_i32 = arith.constant 11 : i32
    %c8_i32_108 = arith.constant 8 : i32
    %341 = arith.muli %c11_i32, %c8_i32_108 : i32
    %342 = tpu.assume_multiple %341, 8 : i32
    %cst_109 = arith.constant dense<0.000000e+00> : vector<8x96xf32>
    %343 = tpu.matmul %332, %19, %cst_109 {dimension_numbers = #tpu.dot_dimension_numbers<[1], [0], [0], [1], [0, 0, 1, 1], [], []>} : vector<8x32xf32>, vector<32x96xf32>, vector<8x96xf32> -> vector<8x96xf32>
    %344 = arith.index_cast %342 : i32 to index
    %c0_110 = arith.constant 0 : index
    %345 = vector.load %arg10[%344, %c0_110] : memref<128x96xf32, #tpu.memory_space<vmem>>, vector<8x96xf32>
    %346 = arith.addf %343, %345 : vector<8x96xf32>
    %347 = vector.extract_strided_slice %346 {offsets = [0, 0], sizes = [8, 64], strides = [1, 1]} : vector<8x96xf32> to vector<8x64xf32>
    %348 = arith.negf %347 : vector<8x64xf32>
    %349 = math.exp %348 : vector<8x64xf32>
    %cst_111 = arith.constant 1.000000e+00 : f32
    %350 = vector.broadcast %cst_111 : f32 to vector<8x64xf32>
    %351 = arith.addf %350, %349 : vector<8x64xf32>
    %352 = arith.divf %350, %351 : vector<8x64xf32>
    %353 = vector.extract_strided_slice %346 {offsets = [0, 64], sizes = [8, 32], strides = [1, 1]} : vector<8x96xf32> to vector<8x32xf32>
    %354 = math.tanh %353 : vector<8x32xf32>
    %355 = vector.extract_strided_slice %352 {offsets = [0, 0], sizes = [8, 32], strides = [1, 1]} : vector<8x64xf32> to vector<8x32xf32>
    %356 = arith.mulf %355, %329 : vector<8x32xf32>
    %357 = arith.mulf %10, %354 : vector<8x32xf32>
    %358 = arith.addf %356, %357 : vector<8x32xf32>
    %359 = vector.extract_strided_slice %352 {offsets = [0, 32], sizes = [8, 32], strides = [1, 1]} : vector<8x64xf32> to vector<8x32xf32>
    %360 = math.tanh %358 : vector<8x32xf32>
    %361 = arith.mulf %359, %360 : vector<8x32xf32>
    %362 = arith.index_cast %c11_i32 : i32 to index
    %c0_112 = arith.constant 0 : index
    %c0_113 = arith.constant 0 : index
    %363 = vector.load %arg8[%362, %c0_112, %c0_113] : memref<16x8x32xf32, #tpu.memory_space<vmem>>, vector<1x8x32xf32>
    %364 = vector.shape_cast %363 : vector<1x8x32xf32> to vector<8x32xf32>
    %365 = vector.shape_cast %361 : vector<8x32xf32> to vector<1x8x32xf32>
    tpu.vector_store %arg8[%362, %c0_112, %c0_113], %365 {strides = array<i32>} : memref<16x8x32xf32, #tpu.memory_space<vmem>>, vector<1x8x32xf32>,
    %366 = arith.index_cast %c11_i32 : i32 to index
    %c0_114 = arith.constant 0 : index
    %c0_115 = arith.constant 0 : index
    %367 = vector.load %arg9[%366, %c0_114, %c0_115] : memref<16x8x32xf32, #tpu.memory_space<vmem>>, vector<1x8x32xf32>
    %368 = vector.shape_cast %367 : vector<1x8x32xf32> to vector<8x32xf32>
    %369 = vector.shape_cast %358 : vector<8x32xf32> to vector<1x8x32xf32>
    tpu.vector_store %arg9[%366, %c0_114, %c0_115], %369 {strides = array<i32>} : memref<16x8x32xf32, #tpu.memory_space<vmem>>, vector<1x8x32xf32>,
    %c12_i32 = arith.constant 12 : i32
    %c8_i32_116 = arith.constant 8 : i32
    %370 = arith.muli %c12_i32, %c8_i32_116 : i32
    %371 = tpu.assume_multiple %370, 8 : i32
    %cst_117 = arith.constant dense<0.000000e+00> : vector<8x96xf32>
    %372 = tpu.matmul %361, %19, %cst_117 {dimension_numbers = #tpu.dot_dimension_numbers<[1], [0], [0], [1], [0, 0, 1, 1], [], []>} : vector<8x32xf32>, vector<32x96xf32>, vector<8x96xf32> -> vector<8x96xf32>
    %373 = arith.index_cast %371 : i32 to index
    %c0_118 = arith.constant 0 : index
    %374 = vector.load %arg10[%373, %c0_118] : memref<128x96xf32, #tpu.memory_space<vmem>>, vector<8x96xf32>
    %375 = arith.addf %372, %374 : vector<8x96xf32>
    %376 = vector.extract_strided_slice %375 {offsets = [0, 0], sizes = [8, 64], strides = [1, 1]} : vector<8x96xf32> to vector<8x64xf32>
    %377 = arith.negf %376 : vector<8x64xf32>
    %378 = math.exp %377 : vector<8x64xf32>
    %cst_119 = arith.constant 1.000000e+00 : f32
    %379 = vector.broadcast %cst_119 : f32 to vector<8x64xf32>
    %380 = arith.addf %379, %378 : vector<8x64xf32>
    %381 = arith.divf %379, %380 : vector<8x64xf32>
    %382 = vector.extract_strided_slice %375 {offsets = [0, 64], sizes = [8, 32], strides = [1, 1]} : vector<8x96xf32> to vector<8x32xf32>
    %383 = math.tanh %382 : vector<8x32xf32>
    %384 = vector.extract_strided_slice %381 {offsets = [0, 0], sizes = [8, 32], strides = [1, 1]} : vector<8x64xf32> to vector<8x32xf32>
    %385 = arith.mulf %384, %358 : vector<8x32xf32>
    %386 = arith.mulf %10, %383 : vector<8x32xf32>
    %387 = arith.addf %385, %386 : vector<8x32xf32>
    %388 = vector.extract_strided_slice %381 {offsets = [0, 32], sizes = [8, 32], strides = [1, 1]} : vector<8x64xf32> to vector<8x32xf32>
    %389 = math.tanh %387 : vector<8x32xf32>
    %390 = arith.mulf %388, %389 : vector<8x32xf32>
    %391 = arith.index_cast %c12_i32 : i32 to index
    %c0_120 = arith.constant 0 : index
    %c0_121 = arith.constant 0 : index
    %392 = vector.load %arg8[%391, %c0_120, %c0_121] : memref<16x8x32xf32, #tpu.memory_space<vmem>>, vector<1x8x32xf32>
    %393 = vector.shape_cast %392 : vector<1x8x32xf32> to vector<8x32xf32>
    %394 = vector.shape_cast %390 : vector<8x32xf32> to vector<1x8x32xf32>
    tpu.vector_store %arg8[%391, %c0_120, %c0_121], %394 {strides = array<i32>} : memref<16x8x32xf32, #tpu.memory_space<vmem>>, vector<1x8x32xf32>,
    %395 = arith.index_cast %c12_i32 : i32 to index
    %c0_122 = arith.constant 0 : index
    %c0_123 = arith.constant 0 : index
    %396 = vector.load %arg9[%395, %c0_122, %c0_123] : memref<16x8x32xf32, #tpu.memory_space<vmem>>, vector<1x8x32xf32>
    %397 = vector.shape_cast %396 : vector<1x8x32xf32> to vector<8x32xf32>
    %398 = vector.shape_cast %387 : vector<8x32xf32> to vector<1x8x32xf32>
    tpu.vector_store %arg9[%395, %c0_122, %c0_123], %398 {strides = array<i32>} : memref<16x8x32xf32, #tpu.memory_space<vmem>>, vector<1x8x32xf32>,
    %c13_i32 = arith.constant 13 : i32
    %c8_i32_124 = arith.constant 8 : i32
    %399 = arith.muli %c13_i32, %c8_i32_124 : i32
    %400 = tpu.assume_multiple %399, 8 : i32
    %cst_125 = arith.constant dense<0.000000e+00> : vector<8x96xf32>
    %401 = tpu.matmul %390, %19, %cst_125 {dimension_numbers = #tpu.dot_dimension_numbers<[1], [0], [0], [1], [0, 0, 1, 1], [], []>} : vector<8x32xf32>, vector<32x96xf32>, vector<8x96xf32> -> vector<8x96xf32>
    %402 = arith.index_cast %400 : i32 to index
    %c0_126 = arith.constant 0 : index
    %403 = vector.load %arg10[%402, %c0_126] : memref<128x96xf32, #tpu.memory_space<vmem>>, vector<8x96xf32>
    %404 = arith.addf %401, %403 : vector<8x96xf32>
    %405 = vector.extract_strided_slice %404 {offsets = [0, 0], sizes = [8, 64], strides = [1, 1]} : vector<8x96xf32> to vector<8x64xf32>
    %406 = arith.negf %405 : vector<8x64xf32>
    %407 = math.exp %406 : vector<8x64xf32>
    %cst_127 = arith.constant 1.000000e+00 : f32
    %408 = vector.broadcast %cst_127 : f32 to vector<8x64xf32>
    %409 = arith.addf %408, %407 : vector<8x64xf32>
    %410 = arith.divf %408, %409 : vector<8x64xf32>
    %411 = vector.extract_strided_slice %404 {offsets = [0, 64], sizes = [8, 32], strides = [1, 1]} : vector<8x96xf32> to vector<8x32xf32>
    %412 = math.tanh %411 : vector<8x32xf32>
    %413 = vector.extract_strided_slice %410 {offsets = [0, 0], sizes = [8, 32], strides = [1, 1]} : vector<8x64xf32> to vector<8x32xf32>
    %414 = arith.mulf %413, %387 : vector<8x32xf32>
    %415 = arith.mulf %10, %412 : vector<8x32xf32>
    %416 = arith.addf %414, %415 : vector<8x32xf32>
    %417 = vector.extract_strided_slice %410 {offsets = [0, 32], sizes = [8, 32], strides = [1, 1]} : vector<8x64xf32> to vector<8x32xf32>
    %418 = math.tanh %416 : vector<8x32xf32>
    %419 = arith.mulf %417, %418 : vector<8x32xf32>
    %420 = arith.index_cast %c13_i32 : i32 to index
    %c0_128 = arith.constant 0 : index
    %c0_129 = arith.constant 0 : index
    %421 = vector.load %arg8[%420, %c0_128, %c0_129] : memref<16x8x32xf32, #tpu.memory_space<vmem>>, vector<1x8x32xf32>
    %422 = vector.shape_cast %421 : vector<1x8x32xf32> to vector<8x32xf32>
    %423 = vector.shape_cast %419 : vector<8x32xf32> to vector<1x8x32xf32>
    tpu.vector_store %arg8[%420, %c0_128, %c0_129], %423 {strides = array<i32>} : memref<16x8x32xf32, #tpu.memory_space<vmem>>, vector<1x8x32xf32>,
    %424 = arith.index_cast %c13_i32 : i32 to index
    %c0_130 = arith.constant 0 : index
    %c0_131 = arith.constant 0 : index
    %425 = vector.load %arg9[%424, %c0_130, %c0_131] : memref<16x8x32xf32, #tpu.memory_space<vmem>>, vector<1x8x32xf32>
    %426 = vector.shape_cast %425 : vector<1x8x32xf32> to vector<8x32xf32>
    %427 = vector.shape_cast %416 : vector<8x32xf32> to vector<1x8x32xf32>
    tpu.vector_store %arg9[%424, %c0_130, %c0_131], %427 {strides = array<i32>} : memref<16x8x32xf32, #tpu.memory_space<vmem>>, vector<1x8x32xf32>,
    %c14_i32 = arith.constant 14 : i32
    %c8_i32_132 = arith.constant 8 : i32
    %428 = arith.muli %c14_i32, %c8_i32_132 : i32
    %429 = tpu.assume_multiple %428, 8 : i32
    %cst_133 = arith.constant dense<0.000000e+00> : vector<8x96xf32>
    %430 = tpu.matmul %419, %19, %cst_133 {dimension_numbers = #tpu.dot_dimension_numbers<[1], [0], [0], [1], [0, 0, 1, 1], [], []>} : vector<8x32xf32>, vector<32x96xf32>, vector<8x96xf32> -> vector<8x96xf32>
    %431 = arith.index_cast %429 : i32 to index
    %c0_134 = arith.constant 0 : index
    %432 = vector.load %arg10[%431, %c0_134] : memref<128x96xf32, #tpu.memory_space<vmem>>, vector<8x96xf32>
    %433 = arith.addf %430, %432 : vector<8x96xf32>
    %434 = vector.extract_strided_slice %433 {offsets = [0, 0], sizes = [8, 64], strides = [1, 1]} : vector<8x96xf32> to vector<8x64xf32>
    %435 = arith.negf %434 : vector<8x64xf32>
    %436 = math.exp %435 : vector<8x64xf32>
    %cst_135 = arith.constant 1.000000e+00 : f32
    %437 = vector.broadcast %cst_135 : f32 to vector<8x64xf32>
    %438 = arith.addf %437, %436 : vector<8x64xf32>
    %439 = arith.divf %437, %438 : vector<8x64xf32>
    %440 = vector.extract_strided_slice %433 {offsets = [0, 64], sizes = [8, 32], strides = [1, 1]} : vector<8x96xf32> to vector<8x32xf32>
    %441 = math.tanh %440 : vector<8x32xf32>
    %442 = vector.extract_strided_slice %439 {offsets = [0, 0], sizes = [8, 32], strides = [1, 1]} : vector<8x64xf32> to vector<8x32xf32>
    %443 = arith.mulf %442, %416 : vector<8x32xf32>
    %444 = arith.mulf %10, %441 : vector<8x32xf32>
    %445 = arith.addf %443, %444 : vector<8x32xf32>
    %446 = vector.extract_strided_slice %439 {offsets = [0, 32], sizes = [8, 32], strides = [1, 1]} : vector<8x64xf32> to vector<8x32xf32>
    %447 = math.tanh %445 : vector<8x32xf32>
    %448 = arith.mulf %446, %447 : vector<8x32xf32>
    %449 = arith.index_cast %c14_i32 : i32 to index
    %c0_136 = arith.constant 0 : index
    %c0_137 = arith.constant 0 : index
    %450 = vector.load %arg8[%449, %c0_136, %c0_137] : memref<16x8x32xf32, #tpu.memory_space<vmem>>, vector<1x8x32xf32>
    %451 = vector.shape_cast %450 : vector<1x8x32xf32> to vector<8x32xf32>
    %452 = vector.shape_cast %448 : vector<8x32xf32> to vector<1x8x32xf32>
    tpu.vector_store %arg8[%449, %c0_136, %c0_137], %452 {strides = array<i32>} : memref<16x8x32xf32, #tpu.memory_space<vmem>>, vector<1x8x32xf32>,
    %453 = arith.index_cast %c14_i32 : i32 to index
    %c0_138 = arith.constant 0 : index
    %c0_139 = arith.constant 0 : index
    %454 = vector.load %arg9[%453, %c0_138, %c0_139] : memref<16x8x32xf32, #tpu.memory_space<vmem>>, vector<1x8x32xf32>
    %455 = vector.shape_cast %454 : vector<1x8x32xf32> to vector<8x32xf32>
    %456 = vector.shape_cast %445 : vector<8x32xf32> to vector<1x8x32xf32>
    tpu.vector_store %arg9[%453, %c0_138, %c0_139], %456 {strides = array<i32>} : memref<16x8x32xf32, #tpu.memory_space<vmem>>, vector<1x8x32xf32>,
    %c15_i32 = arith.constant 15 : i32
    %c8_i32_140 = arith.constant 8 : i32
    %457 = arith.muli %c15_i32, %c8_i32_140 : i32
    %458 = tpu.assume_multiple %457, 8 : i32
    %cst_141 = arith.constant dense<0.000000e+00> : vector<8x96xf32>
    %459 = tpu.matmul %448, %19, %cst_141 {dimension_numbers = #tpu.dot_dimension_numbers<[1], [0], [0], [1], [0, 0, 1, 1], [], []>} : vector<8x32xf32>, vector<32x96xf32>, vector<8x96xf32> -> vector<8x96xf32>
    %460 = arith.index_cast %458 : i32 to index
    %c0_142 = arith.constant 0 : index
    %461 = vector.load %arg10[%460, %c0_142] : memref<128x96xf32, #tpu.memory_space<vmem>>, vector<8x96xf32>
    %462 = arith.addf %459, %461 : vector<8x96xf32>
    %463 = vector.extract_strided_slice %462 {offsets = [0, 0], sizes = [8, 64], strides = [1, 1]} : vector<8x96xf32> to vector<8x64xf32>
    %464 = arith.negf %463 : vector<8x64xf32>
    %465 = math.exp %464 : vector<8x64xf32>
    %cst_143 = arith.constant 1.000000e+00 : f32
    %466 = vector.broadcast %cst_143 : f32 to vector<8x64xf32>
    %467 = arith.addf %466, %465 : vector<8x64xf32>
    %468 = arith.divf %466, %467 : vector<8x64xf32>
    %469 = vector.extract_strided_slice %462 {offsets = [0, 64], sizes = [8, 32], strides = [1, 1]} : vector<8x96xf32> to vector<8x32xf32>
    %470 = math.tanh %469 : vector<8x32xf32>
    %471 = vector.extract_strided_slice %468 {offsets = [0, 0], sizes = [8, 32], strides = [1, 1]} : vector<8x64xf32> to vector<8x32xf32>
    %472 = arith.mulf %471, %445 : vector<8x32xf32>
    %473 = arith.mulf %10, %470 : vector<8x32xf32>
    %474 = arith.addf %472, %473 : vector<8x32xf32>
    %475 = vector.extract_strided_slice %468 {offsets = [0, 32], sizes = [8, 32], strides = [1, 1]} : vector<8x64xf32> to vector<8x32xf32>
    %476 = math.tanh %474 : vector<8x32xf32>
    %477 = arith.mulf %475, %476 : vector<8x32xf32>
    %478 = arith.index_cast %c15_i32 : i32 to index
    %c0_144 = arith.constant 0 : index
    %c0_145 = arith.constant 0 : index
    %479 = vector.load %arg8[%478, %c0_144, %c0_145] : memref<16x8x32xf32, #tpu.memory_space<vmem>>, vector<1x8x32xf32>
    %480 = vector.shape_cast %479 : vector<1x8x32xf32> to vector<8x32xf32>
    %481 = vector.shape_cast %477 : vector<8x32xf32> to vector<1x8x32xf32>
    tpu.vector_store %arg8[%478, %c0_144, %c0_145], %481 {strides = array<i32>} : memref<16x8x32xf32, #tpu.memory_space<vmem>>, vector<1x8x32xf32>,
    %482 = arith.index_cast %c15_i32 : i32 to index
    %c0_146 = arith.constant 0 : index
    %c0_147 = arith.constant 0 : index
    %483 = vector.load %arg9[%482, %c0_146, %c0_147] : memref<16x8x32xf32, #tpu.memory_space<vmem>>, vector<1x8x32xf32>
    %484 = vector.shape_cast %483 : vector<1x8x32xf32> to vector<8x32xf32>
    %485 = vector.shape_cast %474 : vector<8x32xf32> to vector<1x8x32xf32>
    tpu.vector_store %arg9[%482, %c0_146, %c0_147], %485 {strides = array<i32>} : memref<16x8x32xf32, #tpu.memory_space<vmem>>, vector<1x8x32xf32>,
    %c16_i32 = arith.constant 16 : i32
    return
  }
  func.func @transform_0(%arg0: i32) -> (i32, i32, i32) {
    %c0_i32 = arith.constant 0 : i32
    %c0_i32_0 = arith.constant 0 : i32
    %c0_i32_1 = arith.constant 0 : i32
    return %c0_i32, %arg0, %c0_i32_0 : i32, i32, i32
  }
  func.func @transform_1(%arg0: i32) -> (i32, i32) {
    %c0_i32 = arith.constant 0 : i32
    %c0_i32_0 = arith.constant 0 : i32
    return %arg0, %c0_i32 : i32, i32
  }
  func.func @transform_2(%arg0: i32) -> (i32, i32) {
    %c0_i32 = arith.constant 0 : i32
    %c0_i32_0 = arith.constant 0 : i32
    %c0_i32_1 = arith.constant 0 : i32
    return %c0_i32, %c0_i32_0 : i32, i32
  }
  func.func @transform_3(%arg0: i32) -> (i32, i32) {
    %c0_i32 = arith.constant 0 : i32
    %c0_i32_0 = arith.constant 0 : i32
    %c0_i32_1 = arith.constant 0 : i32
    return %c0_i32, %c0_i32_0 : i32, i32
  }
  func.func @transform_4(%arg0: i32) -> (i32, i32) {
    %c0_i32 = arith.constant 0 : i32
    %c0_i32_0 = arith.constant 0 : i32
    %c0_i32_1 = arith.constant 0 : i32
    return %c0_i32, %c0_i32_0 : i32, i32
  }
  func.func @transform_5(%arg0: i32) -> (i32, i32) {
    %c0_i32 = arith.constant 0 : i32
    %c0_i32_0 = arith.constant 0 : i32
    %c0_i32_1 = arith.constant 0 : i32
    return %c0_i32, %c0_i32_0 : i32, i32
  }
  func.func @transform_6(%arg0: i32) -> (i32, i32) {
    %c0_i32 = arith.constant 0 : i32
    %c0_i32_0 = arith.constant 0 : i32
    %c0_i32_1 = arith.constant 0 : i32
    return %c0_i32, %c0_i32_0 : i32, i32
  }
  func.func @transform_7(%arg0: i32) -> (i32, i32, i32) {
    %c0_i32 = arith.constant 0 : i32
    %c0_i32_0 = arith.constant 0 : i32
    %c0_i32_1 = arith.constant 0 : i32
    return %c0_i32, %arg0, %c0_i32_0 : i32, i32, i32
  }
  func.func @transform_8(%arg0: i32) -> (i32, i32, i32) {
    %c0_i32 = arith.constant 0 : i32
    %c0_i32_0 = arith.constant 0 : i32
    %c0_i32_1 = arith.constant 0 : i32
    return %c0_i32, %arg0, %c0_i32_0 : i32, i32, i32
  }
}

</mosaic_0001>

<llo_original>
// kernel: _ealstm_model_forward_impl.1
$region0: #{_ealstm_model_forward_impl.1}
  #allocation0 [shape = 'u32[]', space=smem, size = 0x4, offset = 0x4, fixed_abs, tag = 'smem constant byte address 0x4 - core index']
  #allocation1 [shape = 'u32[72,128]{1,0:T(1,128)}', space=vmem, size = 0x9000, scoped, tag = 'internal scratch']
  #allocation2 [shape = 'f32[128,96]{1,0:T(8,128)}', space=vmem, size = 0x10000, scoped, tag = 'scratch operand']
  %s0 = inlined_call_operand.vmem [shape: f32[16,16,5], index: 0, kind: input, shape index: {}]
  %s1 = inlined_call_operand.vmem [shape: f32[16,7], index: 1, kind: input, shape index: {}]
  %s2 = inlined_call_operand.vmem [shape: f32[5,96], index: 2, kind: input, shape index: {}]
  %s3 = inlined_call_operand.vmem [shape: f32[32,96], index: 3, kind: input, shape index: {}]
  %s4 = inlined_call_operand.vmem [shape: f32[7,32], index: 4, kind: input, shape index: {}]
  %s5 = inlined_call_operand.vmem [shape: f32[1,96], index: 5, kind: input, shape index: {}]
  %s6 = inlined_call_operand.vmem [shape: f32[1,32], index: 6, kind: input, shape index: {}]
  %s7 = inlined_call_operand.vmem [shape: f32[16,16,32], index: 7, kind: output, shape index: {0}]
  %s8 = inlined_call_operand.vmem [shape: f32[16,16,32], index: 8, kind: output, shape index: {1}]
  %9 = xla_tuple %s7, %s8
  %s10 = sld [smem:[#allocation0]]
  $region175: #{_ealstm_model_forward_impl.1} parent=0
    _
  %s12 = ssub.s32 1, %s10
  %s13 = scalar_select 0, %s12, %s10
  $region1: #{_ealstm_model_forward_impl.1} parent=0
    #allocation3 [shape = 'u8[131072]{0}', space=vmem, size = 0x20000, scoped, tag = 'input window, operand 0']
    #allocation4 [shape = 'u8[131072]{0}', space=vmem, size = 0x20000, scoped, tag = 'output window, operand 0']
    #allocation5 [shape = 'u8[131072]{0}', space=vmem, size = 0x20000, scoped, tag = 'output window, operand 1']
    loop: start=0, step=1, limit=4
    $region2: #{_ealstm_model_forward_impl.1} parent=1 // loop_pre_header
      _
    $region3: #{_ealstm_model_forward_impl.1} parent=1 // loop_header
      %s15 = sphi 0, %s19
      %p16 = scmp.ge.s32.totalorder %s15, 4
      %s25 = sphi 0, %s27
      %s28 = sphi 0, %s25
      %s29 = sphi 0, %s28
      %s45 = sphi 0, %s29
      %s51 = sphi 0, %s53
      %s54 = sphi 0, %s51
      %s55 = sphi 0, %s54
      %s71 = sphi 0, %s55
      %s75 = sphi 0, %s75
      %s77 = sphi 0, %s75
      %s78 = sphi 0, %s77
      %s92 = sphi 0, %s78
      %s96 = sphi 0, %s96
      %s98 = sphi 0, %s96
      %s99 = sphi 0, %s98
      %s113 = sphi 0, %s99
      %s117 = sphi 0, %s117
      %s119 = sphi 0, %s117
      %s120 = sphi 0, %s119
      %s134 = sphi 0, %s120
      %s138 = sphi 0, %s138
      %s140 = sphi 0, %s138
      %s141 = sphi 0, %s140
      %s155 = sphi 0, %s141
      %s159 = sphi 0, %s159
      %s161 = sphi 0, %s159
      %s162 = sphi 0, %s161
      %s176 = sphi 0, %s162
      %s182 = sphi 0, %s184
      %s185 = sphi 0, %s182
      %s186 = sphi 0, %s185
      %s202 = sphi 0, %s186
      %s208 = sphi 0, %s210
      %s211 = sphi 0, %s208
      %s212 = sphi 0, %s211
      %s228 = sphi 0, %s212
    $region4: #{_ealstm_model_forward_impl.1} parent=1 // loop_header_branch
      %18 = sbr.rel (%p16) target = $region8
    $region5: #{_ealstm_model_forward_impl.1} parent=1 // loop_body
      %s20 = ssub.s32 %s15, 1
      %s21 = ssub.s32 %s15, 2
      %s22 = sadd.s32 %s15, 1
      %s23 = ssub.s32 %s15, %s22
      %p24 = scmp.eq.s32.totalorder %s23, 0
      %s26 = sadd.s32 %s25, 1
      %s27 = scalar_select %p24, %s25, %s26
      %p30 = pneg %p24
      %p31 = scmp.eq.s32.totalorder %s15, 1
      %p32 = por %p30, %p31
      %p33 = scmp.ne.s32.totalorder %s25, %s28
      %p34 = scmp.eq.s32.totalorder %s15, 0
      %p35 = por %p33, %p34
      %p36 = scmp.ne.s32.totalorder %s25, %s28
      %p37 = scmp.eq.s32.totalorder %s20, 1
      %p38 = por %p36, %p37
      %p39 = scmp.ne.s32.totalorder %s28, %s29
      %p40 = scmp.eq.s32.totalorder %s20, 0
      %p41 = por %p39, %p40
      %p42 = scmp.ne.s32.totalorder %s28, %s29
      %p43 = scmp.eq.s32.totalorder %s21, 1
      %p44 = por %p42, %p43
      %p46 = scmp.ne.s32.totalorder %s29, %s45
      %p47 = scmp.eq.s32.totalorder %s21, 0
      %p48 = por %p46, %p47
      %s49 = ssub.s32 %s15, %s22
      %p50 = scmp.eq.s32.totalorder %s49, 0
      %s52 = sadd.s32 %s51, 1
      %s53 = scalar_select %p50, %s51, %s52
      %p56 = pneg %p50
      %p57 = scmp.eq.s32.totalorder %s15, 1
      %p58 = por %p56, %p57
      %p59 = scmp.ne.s32.totalorder %s51, %s54
      %p60 = scmp.eq.s32.totalorder %s15, 0
      %p61 = por %p59, %p60
      %p62 = scmp.ne.s32.totalorder %s51, %s54
      %p63 = scmp.eq.s32.totalorder %s20, 1
      %p64 = por %p62, %p63
      %p65 = scmp.ne.s32.totalorder %s54, %s55
      %p66 = scmp.eq.s32.totalorder %s20, 0
      %p67 = por %p65, %p66
      %p68 = scmp.ne.s32.totalorder %s54, %s55
      %p69 = scmp.eq.s32.totalorder %s21, 1
      %p70 = por %p68, %p69
      %p72 = scmp.ne.s32.totalorder %s55, %s71
      %p73 = scmp.eq.s32.totalorder %s21, 0
      %p74 = por %p72, %p73
      %s76 = sadd.s32 %s75, 1
      %p79 = scmp.eq.s32.totalorder %s15, 1
      %p80 = scmp.ne.s32.totalorder %s75, %s77
      %p81 = scmp.eq.s32.totalorder %s15, 0
      %p82 = por %p80, %p81
      %p83 = scmp.ne.s32.totalorder %s75, %s77
      %p84 = scmp.eq.s32.totalorder %s20, 1
      %p85 = por %p83, %p84
      %p86 = scmp.ne.s32.totalorder %s77, %s78
      %p87 = scmp.eq.s32.totalorder %s20, 0
      %p88 = por %p86, %p87
      %p89 = scmp.ne.s32.totalorder %s77, %s78
      %p90 = scmp.eq.s32.totalorder %s21, 1
      %p91 = por %p89, %p90
      %p93 = scmp.ne.s32.totalorder %s78, %s92
      %p94 = scmp.eq.s32.totalorder %s21, 0
      %p95 = por %p93, %p94
      %s97 = sadd.s32 %s96, 1
      %p100 = scmp.eq.s32.totalorder %s15, 1
      %p101 = scmp.ne.s32.totalorder %s96, %s98
      %p102 = scmp.eq.s32.totalorder %s15, 0
      %p103 = por %p101, %p102
      %p104 = scmp.ne.s32.totalorder %s96, %s98
      %p105 = scmp.eq.s32.totalorder %s20, 1
      %p106 = por %p104, %p105
      %p107 = scmp.ne.s32.totalorder %s98, %s99
      %p108 = scmp.eq.s32.totalorder %s20, 0
      %p109 = por %p107, %p108
      %p110 = scmp.ne.s32.totalorder %s98, %s99
      %p111 = scmp.eq.s32.totalorder %s21, 1
      %p112 = por %p110, %p111
      %p114 = scmp.ne.s32.totalorder %s99, %s113
      %p115 = scmp.eq.s32.totalorder %s21, 0
      %p116 = por %p114, %p115
      %s118 = sadd.s32 %s117, 1
      %p121 = scmp.eq.s32.totalorder %s15, 1
      %p122 = scmp.ne.s32.totalorder %s117, %s119
      %p123 = scmp.eq.s32.totalorder %s15, 0
      %p124 = por %p122, %p123
      %p125 = scmp.ne.s32.totalorder %s117, %s119
      %p126 = scmp.eq.s32.totalorder %s20, 1
      %p127 = por %p125, %p126
      %p128 = scmp.ne.s32.totalorder %s119, %s120
      %p129 = scmp.eq.s32.totalorder %s20, 0
      %p130 = por %p128, %p129
      %p131 = scmp.ne.s32.totalorder %s119, %s120
      %p132 = scmp.eq.s32.totalorder %s21, 1
      %p133 = por %p131, %p132
      %p135 = scmp.ne.s32.totalorder %s120, %s134
      %p136 = scmp.eq.s32.totalorder %s21, 0
      %p137 = por %p135, %p136
      %s139 = sadd.s32 %s138, 1
      %p142 = scmp.eq.s32.totalorder %s15, 1
      %p143 = scmp.ne.s32.totalorder %s138, %s140
      %p144 = scmp.eq.s32.totalorder %s15, 0
      %p145 = por %p143, %p144
      %p146 = scmp.ne.s32.totalorder %s138, %s140
      %p147 = scmp.eq.s32.totalorder %s20, 1
      %p148 = por %p146, %p147
      %p149 = scmp.ne.s32.totalorder %s140, %s141
      %p150 = scmp.eq.s32.totalorder %s20, 0
      %p151 = por %p149, %p150
      %p152 = scmp.ne.s32.totalorder %s140, %s141
      %p153 = scmp.eq.s32.totalorder %s21, 1
      %p154 = por %p152, %p153
      %p156 = scmp.ne.s32.totalorder %s141, %s155
      %p157 = scmp.eq.s32.totalorder %s21, 0
      %p158 = por %p156, %p157
      %s160 = sadd.s32 %s159, 1
      %p163 = scmp.eq.s32.totalorder %s15, 1
      %p164 = scmp.ne.s32.totalorder %s159, %s161
      %p165 = scmp.eq.s32.totalorder %s15, 0
      %p166 = por %p164, %p165
      %p167 = scmp.ne.s32.totalorder %s159, %s161
      %p168 = scmp.eq.s32.totalorder %s20, 1
      %p169 = por %p167, %p168
      %p170 = scmp.ne.s32.totalorder %s161, %s162
      %p171 = scmp.eq.s32.totalorder %s20, 0
      %p172 = por %p170, %p171
      %p173 = scmp.ne.s32.totalorder %s161, %s162
      %p174 = scmp.eq.s32.totalorder %s21, 1
      %p175 = por %p173, %p174
      %p177 = scmp.ne.s32.totalorder %s162, %s176
      %p178 = scmp.eq.s32.totalorder %s21, 0
      %p179 = por %p177, %p178
      %s180 = ssub.s32 %s15, %s22
      %p181 = scmp.eq.s32.totalorder %s180, 0
      %s183 = sadd.s32 %s182, 1
      %s184 = scalar_select %p181, %s182, %s183
      %p187 = pneg %p181
      %p188 = scmp.eq.s32.totalorder %s15, 1
      %p189 = por %p187, %p188
      %p190 = scmp.ne.s32.totalorder %s182, %s185
      %p191 = scmp.eq.s32.totalorder %s15, 0
      %p192 = por %p190, %p191
      %p193 = scmp.ne.s32.totalorder %s182, %s185
      %p194 = scmp.eq.s32.totalorder %s20, 1
      %p195 = por %p193, %p194
      %p196 = scmp.ne.s32.totalorder %s185, %s186
      %p197 = scmp.eq.s32.totalorder %s20, 0
      %p198 = por %p196, %p197
      %p199 = scmp.ne.s32.totalorder %s185, %s186
      %p200 = scmp.eq.s32.totalorder %s21, 1
      %p201 = por %p199, %p200
      %p203 = scmp.ne.s32.totalorder %s186, %s202
      %p204 = scmp.eq.s32.totalorder %s21, 0
      %p205 = por %p203, %p204
      %s206 = ssub.s32 %s15, %s22
      %p207 = scmp.eq.s32.totalorder %s206, 0
      %s209 = sadd.s32 %s208, 1
      %s210 = scalar_select %p207, %s208, %s209
      %p213 = pneg %p207
      %p214 = scmp.eq.s32.totalorder %s15, 1
      %p215 = por %p213, %p214
      %p216 = scmp.ne.s32.totalorder %s208, %s211
      %p217 = scmp.eq.s32.totalorder %s15, 0
      %p218 = por %p216, %p217
      %p219 = scmp.ne.s32.totalorder %s208, %s211
      %p220 = scmp.eq.s32.totalorder %s20, 1
      %p221 = por %p219, %p220
      %p222 = scmp.ne.s32.totalorder %s211, %s212
      %p223 = scmp.eq.s32.totalorder %s20, 0
      %p224 = por %p222, %p223
      %p225 = scmp.ne.s32.totalorder %s211, %s212
      %p226 = scmp.eq.s32.totalorder %s21, 1
      %p227 = por %p225, %p226
      %p229 = scmp.ne.s32.totalorder %s212, %s228
      %p230 = scmp.eq.s32.totalorder %s21, 0
      %p231 = por %p229, %p230
      %p232 = scmp.le.s32.totalorder 1, %s15
      %p233 = scmp.lt.s32.totalorder %s15, 3
      %p234 = pnand %p232, %p233
      %p235 = pneg %p234
      // Predicated region
      $region9: #{_ealstm_model_forward_impl.1} parent=5 // pred_check
        _
      $region10: #{_ealstm_model_forward_impl.1} parent=5 // pred_check_branch
        %237 = sbr.rel (%p234) target = $region12
      $region11: #{_ealstm_model_forward_impl.1} parent=5 // pred_region
        %s238 = ssub.s32 %s15, 1
        // Predicated region
        $region13: #{_ealstm_model_forward_impl.1} parent=11 // pred_check
          %p239 = pneg %p88
        $region14: #{_ealstm_model_forward_impl.1} parent=11 // pred_check_branch
          %241 = sbr.rel (%p239) target = $region16
        $region15: #{_ealstm_model_forward_impl.1} parent=11 // pred_region
          _
        $region16: #{_ealstm_model_forward_impl.1} parent=11 // pred_fallthru
          _
        // Predicated region
        $region17: #{_ealstm_model_forward_impl.1} parent=11 // pred_check
          %p242 = pneg %p109
        $region18: #{_ealstm_model_forward_impl.1} parent=11 // pred_check_branch
          %244 = sbr.rel (%p242) target = $region20
        $region19: #{_ealstm_model_forward_impl.1} parent=11 // pred_region
          _
        $region20: #{_ealstm_model_forward_impl.1} parent=11 // pred_fallthru
          _
        // Predicated region
        $region21: #{_ealstm_model_forward_impl.1} parent=11 // pred_check
          %p245 = pneg %p130
        $region22: #{_ealstm_model_forward_impl.1} parent=11 // pred_check_branch
          %247 = sbr.rel (%p245) target = $region24
        $region23: #{_ealstm_model_forward_impl.1} parent=11 // pred_region
          _
        $region24: #{_ealstm_model_forward_impl.1} parent=11 // pred_fallthru
          _
        // Predicated region
        $region25: #{_ealstm_model_forward_impl.1} parent=11 // pred_check
          %p248 = pneg %p151
        $region26: #{_ealstm_model_forward_impl.1} parent=11 // pred_check_branch
          %250 = sbr.rel (%p248) target = $region28
        $region27: #{_ealstm_model_forward_impl.1} parent=11 // pred_region
          _
        $region28: #{_ealstm_model_forward_impl.1} parent=11 // pred_fallthru
          _
        // Predicated region
        $region29: #{_ealstm_model_forward_impl.1} parent=11 // pred_check
          %p251 = pneg %p172
        $region30: #{_ealstm_model_forward_impl.1} parent=11 // pred_check_branch
          %253 = sbr.rel (%p251) target = $region32
        $region31: #{_ealstm_model_forward_impl.1} parent=11 // pred_region
          _
        $region32: #{_ealstm_model_forward_impl.1} parent=11 // pred_fallthru
          _
      $region12: #{_ealstm_model_forward_impl.1} parent=5 // pred_fallthru
        _
      %p254 = scmp.lt.s32.totalorder %s15, 2
      // Predicated region
      $region33: #{_ealstm_model_forward_impl.1} parent=5 // pred_check
        %p255 = pneg %p254
      $region34: #{_ealstm_model_forward_impl.1} parent=5 // pred_check_branch
        %257 = sbr.rel (%p255) target = $region36
      $region35: #{_ealstm_model_forward_impl.1} parent=5 // pred_region
        // Predicated region
        $region37: #{_ealstm_model_forward_impl.1} parent=35 // pred_check
          %p258 = pneg %p35
        $region38: #{_ealstm_model_forward_impl.1} parent=35 // pred_check_branch
          %260 = sbr.rel (%p258) target = $region40
        $region39: #{_ealstm_model_forward_impl.1} parent=35 // pred_region
          %s261 = sand.u32 %s25, 1
          %s262 = sand.u32 %s25, 1
          %s263 = smul.addr %s262, 128
          %s264 = scalar_lea.vmem [#allocation3], %s263
          %s265 = smul.addr %s15, 8
          %s266 = scalar_lea.vmem %s0, %s265
          // Predicated region
          $region41: #{_ealstm_model_forward_impl.1} parent=39 // pred_check
            _
          $region42: #{_ealstm_model_forward_impl.1} parent=39 // pred_check_branch
            %268 = sbr.rel (0) target = $region44
          $region43: #{_ealstm_model_forward_impl.1} parent=39 // pred_region
            // Predicated region
            $region45: #{_ealstm_model_forward_impl.1} parent=43 // pred_check
              _
            $region46: #{_ealstm_model_forward_impl.1} parent=43 // pred_check_branch
              %270 = sbr.rel (0) target = $region48
            $region47: #{_ealstm_model_forward_impl.1} parent=43 // pred_region
              // Predicated region
              $region60: #{_ealstm_model_forward_impl.1} parent=47 // pred_check
                _
              $region61: #{_ealstm_model_forward_impl.1} parent=47 // pred_check_branch
                %316 = sbr.rel (0) target = $region63
              $region62: #{_ealstm_model_forward_impl.1} parent=47 // pred_region
                loop: start=0, step=1, limit=1
                $region64: #{_ealstm_model_forward_impl.1} parent=62 // loop_pre_header
                  _
                $region65: #{_ealstm_model_forward_impl.1} parent=62 // loop_header
                  %s318 = sphi 0, %s322
                  %p319 = scmp.ge.s32.totalorder %s318, 1
                  %s323 = sphi %s266, %s266
                  %s324 = sphi %s264, %s264
                $region66: #{_ealstm_model_forward_impl.1} parent=62 // loop_header_branch
                  %321 = sbr.rel (%p319) target = $region70
                $region67: #{_ealstm_model_forward_impl.1} parent=62 // loop_body
                  %v325 = vld [vmem:[%s323] sm:$0xff]
                  %326 = vst [vmem:[%s324] sm:$0xff] %v325
                  %v327 = vld [vmem:[%s323 + $0x10] sm:$0xff]
                  %328 = vst [vmem:[%s324 + $0x8] sm:$0xff] %v327
                  %v329 = vld [vmem:[%s323 + $0x20] sm:$0xff]
                  %330 = vst [vmem:[%s324 + $0x10] sm:$0xff] %v329
                  %v331 = vld [vmem:[%s323 + $0x30] sm:$0xff]
                  %332 = vst [vmem:[%s324 + $0x18] sm:$0xff] %v331
                  %v333 = vld [vmem:[%s323 + $0x40] sm:$0xff]
                  %334 = vst [vmem:[%s324 + $0x20] sm:$0xff] %v333
                  %v335 = vld [vmem:[%s323 + $0x50] sm:$0xff]
                  %336 = vst [vmem:[%s324 + $0x28] sm:$0xff] %v335
                  %v337 = vld [vmem:[%s323 + $0x60] sm:$0xff]
                  %338 = vst [vmem:[%s324 + $0x30] sm:$0xff] %v337
                  %v339 = vld [vmem:[%s323 + $0x70] sm:$0xff]
                  %340 = vst [vmem:[%s324 + $0x38] sm:$0xff] %v339
                  %v341 = vld [vmem:[%s323 + $0x80] sm:$0xff]
                  %342 = vst [vmem:[%s324 + $0x40] sm:$0xff] %v341
                  %v343 = vld [vmem:[%s323 + $0x90] sm:$0xff]
                  %344 = vst [vmem:[%s324 + $0x48] sm:$0xff] %v343
                  %v345 = vld [vmem:[%s323 + $0xa0] sm:$0xff]
                  %346 = vst [vmem:[%s324 + $0x50] sm:$0xff] %v345
                  %v347 = vld [vmem:[%s323 + $0xb0] sm:$0xff]
                  %348 = vst [vmem:[%s324 + $0x58] sm:$0xff] %v347
                  %v349 = vld [vmem:[%s323 + $0xc0] sm:$0xff]
                  %350 = vst [vmem:[%s324 + $0x60] sm:$0xff] %v349
                  %v351 = vld [vmem:[%s323 + $0xd0] sm:$0xff]
                  %352 = vst [vmem:[%s324 + $0x68] sm:$0xff] %v351
                  %v353 = vld [vmem:[%s323 + $0xe0] sm:$0xff]
                  %354 = vst [vmem:[%s324 + $0x70] sm:$0xff] %v353
                  %v355 = vld [vmem:[%s323 + $0xf0] sm:$0xff]
                  %356 = vst [vmem:[%s324 + $0x78] sm:$0xff] %v355
                $region68: #{_ealstm_model_forward_impl.1} parent=62 // loop_footer
                  %s322 = sadd.s32 1, %s318
                $region69: #{_ealstm_model_forward_impl.1} parent=62 // loop_footer_branch
                  %317 = sbr.rel target = $region65
                $region70: #{_ealstm_model_forward_impl.1} parent=62 // loop_exit
                  _
              $region63: #{_ealstm_model_forward_impl.1} parent=47 // pred_fallthru
                _
              // Predicated region
              $region71: #{_ealstm_model_forward_impl.1} parent=47 // pred_check
                _
              $region72: #{_ealstm_model_forward_impl.1} parent=47 // pred_check_branch
                %358 = sbr.rel target = $region74
              $region73: #{_ealstm_model_forward_impl.1} parent=47 // pred_region
                _
              $region74: #{_ealstm_model_forward_impl.1} parent=47 // pred_fallthru
                _
            $region48: #{_ealstm_model_forward_impl.1} parent=43 // pred_fallthru
              _
            // Predicated region
            $region49: #{_ealstm_model_forward_impl.1} parent=43 // pred_check
              _
            $region50: #{_ealstm_model_forward_impl.1} parent=43 // pred_check_branch
              %272 = sbr.rel target = $region52
            $region51: #{_ealstm_model_forward_impl.1} parent=43 // pred_region
              %s274 = ssub.s32 256, 1
              loop: start=0, step=1, limit=1
              $region53: #{_ealstm_model_forward_impl.1} parent=51 // loop_pre_header
                _
              $region54: #{_ealstm_model_forward_impl.1} parent=51 // loop_header
                %s276 = sphi 0, %s280
                %p277 = scmp.ge.s32.totalorder %s276, 1
                %s281 = sphi %s266, %s266
                %s282 = sphi %s264, %s264
              $region55: #{_ealstm_model_forward_impl.1} parent=51 // loop_header_branch
                %279 = sbr.rel (%p277) target = $region59
              $region56: #{_ealstm_model_forward_impl.1} parent=51 // loop_body
                %v283 = vld [vmem:[%s281] sm:%s274]
                %284 = vst [vmem:[%s282] sm:%s274] %v283
                %v285 = vld [vmem:[%s281 + $0x10] sm:%s274]
                %286 = vst [vmem:[%s282 + $0x8] sm:%s274] %v285
                %v287 = vld [vmem:[%s281 + $0x20] sm:%s274]
                %288 = vst [vmem:[%s282 + $0x10] sm:%s274] %v287
                %v289 = vld [vmem:[%s281 + $0x30] sm:%s274]
                %290 = vst [vmem:[%s282 + $0x18] sm:%s274] %v289
                %v291 = vld [vmem:[%s281 + $0x40] sm:%s274]
                %292 = vst [vmem:[%s282 + $0x20] sm:%s274] %v291
                %v293 = vld [vmem:[%s281 + $0x50] sm:%s274]
                %294 = vst [vmem:[%s282 + $0x28] sm:%s274] %v293
                %v295 = vld [vmem:[%s281 + $0x60] sm:%s274]
                %296 = vst [vmem:[%s282 + $0x30] sm:%s274] %v295
                %v297 = vld [vmem:[%s281 + $0x70] sm:%s274]
                %298 = vst [vmem:[%s282 + $0x38] sm:%s274] %v297
                %v299 = vld [vmem:[%s281 + $0x80] sm:%s274]
                %300 = vst [vmem:[%s282 + $0x40] sm:%s274] %v299
                %v301 = vld [vmem:[%s281 + $0x90] sm:%s274]
                %302 = vst [vmem:[%s282 + $0x48] sm:%s274] %v301
                %v303 = vld [vmem:[%s281 + $0xa0] sm:%s274]
                %304 = vst [vmem:[%s282 + $0x50] sm:%s274] %v303
                %v305 = vld [vmem:[%s281 + $0xb0] sm:%s274]
                %306 = vst [vmem:[%s282 + $0x58] sm:%s274] %v305
                %v307 = vld [vmem:[%s281 + $0xc0] sm:%s274]
                %308 = vst [vmem:[%s282 + $0x60] sm:%s274] %v307
                %v309 = vld [vmem:[%s281 + $0xd0] sm:%s274]
                %310 = vst [vmem:[%s282 + $0x68] sm:%s274] %v309
                %v311 = vld [vmem:[%s281 + $0xe0] sm:%s274]
                %312 = vst [vmem:[%s282 + $0x70] sm:%s274] %v311
                %v313 = vld [vmem:[%s281 + $0xf0] sm:%s274]
                %314 = vst [vmem:[%s282 + $0x78] sm:%s274] %v313
              $region57: #{_ealstm_model_forward_impl.1} parent=51 // loop_footer
                %s280 = sadd.s32 1, %s276
              $region58: #{_ealstm_model_forward_impl.1} parent=51 // loop_footer_branch
                %275 = sbr.rel target = $region54
              $region59: #{_ealstm_model_forward_impl.1} parent=51 // loop_exit
                _
            $region52: #{_ealstm_model_forward_impl.1} parent=43 // pred_fallthru
              _
          $region44: #{_ealstm_model_forward_impl.1} parent=39 // pred_fallthru
            _
          %359 = vnop
        $region40: #{_ealstm_model_forward_impl.1} parent=35 // pred_fallthru
          _
        // Predicated region
        $region75: #{_ealstm_model_forward_impl.1} parent=35 // pred_check
          %p360 = pneg %p61
        $region76: #{_ealstm_model_forward_impl.1} parent=35 // pred_check_branch
          %362 = sbr.rel (%p360) target = $region78
        $region77: #{_ealstm_model_forward_impl.1} parent=35 // pred_region
          %p363 = scmp.lt.s32.totalorder %s15, 1
          %s364 = scalar_select %p363, %s15, 1
          %s365 = smul.addr %s364, 8
          %s366 = scalar_lea.vmem %s1, %s365
        $region78: #{_ealstm_model_forward_impl.1} parent=35 // pred_fallthru
          _
      $region36: #{_ealstm_model_forward_impl.1} parent=5 // pred_fallthru
        _
      %p367 = scmp.le.s32.totalorder 1, %s15
      %p368 = scmp.lt.s32.totalorder %s15, 3
      %p369 = pnand %p367, %p368
      %p370 = pneg %p369
      // Predicated region
      $region79: #{_ealstm_model_forward_impl.1} parent=5 // pred_check
        _
      $region80: #{_ealstm_model_forward_impl.1} parent=5 // pred_check_branch
        %372 = sbr.rel (%p369) target = $region82
      $region81: #{_ealstm_model_forward_impl.1} parent=5 // pred_region
        %s373 = ssub.s32 %s15, 1
        %s374 = sand.u32 %s28, 1
        %s375 = sand.u32 %s28, 1
        %s376 = smul.addr %s375, 128
        %s377 = scalar_lea.vmem [#allocation3], %s376
        // Predicated region
        $region83: #{_ealstm_model_forward_impl.1} parent=81 // pred_check
          %p378 = pneg %p41
        $region84: #{_ealstm_model_forward_impl.1} parent=81 // pred_check_branch
          %380 = sbr.rel (%p378) target = $region86
        $region85: #{_ealstm_model_forward_impl.1} parent=81 // pred_region
          _
        $region86: #{_ealstm_model_forward_impl.1} parent=81 // pred_fallthru
          _
        %s381 = sand.u32 %s28, 1
        %s382 = sand.u32 %s28, 1
        %s383 = smul.addr %s382, 128
        %s384 = scalar_lea.vmem [#allocation3], %s383
        %p385 = pneg %p41
        %p386 = pneg %p38
        %p387 = scmp.lt.s32.totalorder %s20, 1
        %s388 = scalar_select %p387, %s20, 1
        %s389 = smul.addr %s388, 8
        %s390 = scalar_lea.vmem %s1, %s389
        %p391 = pneg %p67
        %p392 = pneg %p64
        %p393 = pneg %p88
        %p394 = pneg %p85
        %p395 = pneg %p109
        %p396 = pneg %p106
        %p397 = pneg %p130
        %p398 = pneg %p127
        %p399 = pneg %p151
        %p400 = pneg %p148
        %p401 = pneg %p172
        %p402 = pneg %p169
        %p403 = pneg %p198
        %p404 = pneg %p195
        %s405 = sand.u32 %s185, 1
        %s406 = sand.u32 %s185, 1
        %s407 = smul.addr %s406, 128
        %s408 = scalar_lea.vmem [#allocation4], %s407
        %p409 = pneg %p224
        %p410 = pneg %p221
        %s411 = sand.u32 %s211, 1
        %s412 = sand.u32 %s211, 1
        %s413 = smul.addr %s412, 128
        %s414 = scalar_lea.vmem [#allocation5], %s413
        %p415 = scmp.lt.s32.totalorder %s20, 1
        %s416 = scalar_select %p415, %s20, 1
        %s417 = smul.addr %s416, 8
        %s418 = scalar_lea.vmem %s1, %s417
        %v419 = vld [vmem:[%s418] sm:$0xff]
        %v420 = vld [vmem:[%s4] sm:$0x7f]
        %v421 = vld [vmem:[%s6] sm:$0x1]
        %v423 = vperm.slane %v421, 0
        %vm425 = vcmask 56320
        %v427 = vsel %vm425, %v419, 0
        %vm429 = vcmask 1046528
        %v431 = vsel %vm429, %v420, 0
        %433 = vmatpush.msra.mxu0 0.0
        %434 = vmatpush.msra.mxu0 0.0
        %435 = vmatpush.msra.mxu0 0.0
        %436 = vmatpush.msra.mxu0 0.0
        %437 = vmatpush.msra.mxu0 0.0
        %438 = vmatpush.msra.mxu0 0.0
        %439 = vmatpush.msra.mxu0 0.0
        %440 = vmatpush.msra.mxu0 0.0
        %441 = vmatpush.msra.mxu0 0.0
        %442 = vmatpush.msra.mxu0 0.0
        %443 = vmatpush.msra.mxu0 0.0
        %444 = vmatpush.msra.mxu0 0.0
        %445 = vmatpush.msra.mxu0 0.0
        %446 = vmatpush.msra.mxu0 0.0
        %447 = vmatpush.msra.mxu0 0.0
        %448 = vmatpush.msra.mxu0 %v431
        %449 = vmatmul.f32.gmra.mxu0 %v427
        %v450 = vpop.f32.mrf.mxu0
        %v451 = vadd.f32 %v423, %v450
        %452 = vdwg.mxu0
        %v453 = vxor.u32 %v451, 2147483648
        %v454 = vmul.f32 %v453, 1.442695
        %v455 = vpow.pop %v454
        %v456 = vadd.f32 %v455, 1.0
        %v457 = vrcp.pop %v456
        %v458 = vmul.f32 %v456, %v457
        %v459 = vsub.f32 1.0, %v458
        %v460 = vmul.f32 %v457, %v459
        %v461 = vadd.f32 %v457, %v460
        %vm462 = vweird.f32 %v456
        %vm463 = vweird.f32 %v457
        %vm464 = vmor %vm462, %vm463
        %v465 = vsel %vm464, %v457, %v461
        %v466 = vand.u32 2147483647, %v456
        %vm467 = vcmp.eq.f32.partialorder %v466, 8.507059e+37
        %v468 = vand.u32 %v456, 2147483648
        %v469 = vor.u32 1.1754944e-38, %v468
        %v470 = vsel %vm467, %v469, %v465
        %v471 = vmul.f32 1.0, %v470
        %v472 = vld [vmem:[%s377] sm:$0xff]
        %v473 = vld [vmem:[%s377 + $0x8] sm:$0xff]
        %v474 = vld [vmem:[%s377 + $0x10] sm:$0xff]
        %v475 = vld [vmem:[%s377 + $0x18] sm:$0xff]
        %v476 = vld [vmem:[%s377 + $0x20] sm:$0xff]
        %v477 = vld [vmem:[%s377 + $0x28] sm:$0xff]
        %v478 = vld [vmem:[%s377 + $0x30] sm:$0xff]
        %v479 = vld [vmem:[%s377 + $0x38] sm:$0xff]
        %v480 = vld [vmem:[%s377 + $0x40] sm:$0xff]
        %v481 = vld [vmem:[%s377 + $0x48] sm:$0xff]
        %v482 = vld [vmem:[%s377 + $0x50] sm:$0xff]
        %v483 = vld [vmem:[%s377 + $0x58] sm:$0xff]
        %v484 = vld [vmem:[%s377 + $0x60] sm:$0xff]
        %v485 = vld [vmem:[%s377 + $0x68] sm:$0xff]
        %v486 = vld [vmem:[%s377 + $0x70] sm:$0xff]
        %v487 = vld [vmem:[%s377 + $0x78] sm:$0xff]
        %v488 = vld [vmem:[%s2] sm:$0x1f]
        %v489 = vld [vmem:[%s5] sm:$0x1]
        %v491 = vperm.slane %v489, 0
        %vm493 = vcmask 39936
        %v495 = vsel %vm493, %v472, 0
        %v498 = vsel %vm493, %v473, 0
        %v501 = vsel %vm493, %v474, 0
        %v504 = vsel %vm493, %v475, 0
        %v507 = vsel %vm493, %v476, 0
        %v510 = vsel %vm493, %v477, 0
        %v513 = vsel %vm493, %v478, 0
        %v516 = vsel %vm493, %v479, 0
        %v519 = vsel %vm493, %v480, 0
        %v522 = vsel %vm493, %v481, 0
        %v525 = vsel %vm493, %v482, 0
        %v528 = vsel %vm493, %v483, 0
        %v531 = vsel %vm493, %v484, 0
        %v534 = vsel %vm493, %v485, 0
        %v537 = vsel %vm493, %v486, 0
        %v540 = vsel %vm493, %v487, 0
        %vm542 = vcmask 1044480
        %v544 = vsel %vm542, %v488, 0
        %546 = vmatpush.msra.mxu0 0.0
        %547 = vmatpush.msra.mxu0 0.0
        %548 = vmatpush.msra.mxu0 0.0
        %549 = vmatpush.msra.mxu0 0.0
        %550 = vmatpush.msra.mxu0 0.0
        %551 = vmatpush.msra.mxu0 0.0
        %552 = vmatpush.msra.mxu0 0.0
        %553 = vmatpush.msra.mxu0 0.0
        %554 = vmatpush.msra.mxu0 0.0
        %555 = vmatpush.msra.mxu0 0.0
        %556 = vmatpush.msra.mxu0 0.0
        %557 = vmatpush.msra.mxu0 0.0
        %558 = vmatpush.msra.mxu0 0.0
        %559 = vmatpush.msra.mxu0 0.0
        %560 = vmatpush.msra.mxu0 0.0
        %561 = vmatpush.msra.mxu0 %v544
        %562 = vmatmul.f32.gmra.mxu0 %v495
        %v563 = vpop.f32.mrf.mxu0
        %v564 = vadd.f32 %v491, %v563
        %565 = vmatmul.f32.gmra.mxu0 %v498
        %v566 = vpop.f32.mrf.mxu0
        %v567 = vadd.f32 %v491, %v566
        %568 = vmatmul.f32.gmra.mxu0 %v501
        %v569 = vpop.f32.mrf.mxu0
        %v570 = vadd.f32 %v491, %v569
        %571 = vmatmul.f32.gmra.mxu0 %v504
        %v572 = vpop.f32.mrf.mxu0
        %v573 = vadd.f32 %v491, %v572
        %574 = vmatmul.f32.gmra.mxu0 %v507
        %v575 = vpop.f32.mrf.mxu0
        %v576 = vadd.f32 %v491, %v575
        %577 = vmatmul.f32.gmra.mxu0 %v510
        %v578 = vpop.f32.mrf.mxu0
        %v579 = vadd.f32 %v491, %v578
        %580 = vmatmul.f32.gmra.mxu0 %v513
        %v581 = vpop.f32.mrf.mxu0
        %v582 = vadd.f32 %v491, %v581
        %583 = vmatmul.f32.gmra.mxu0 %v516
        %v584 = vpop.f32.mrf.mxu0
        %v585 = vadd.f32 %v491, %v584
        %586 = vmatmul.f32.gmra.mxu0 %v519
        %v587 = vpop.f32.mrf.mxu0
        %v588 = vadd.f32 %v491, %v587
        %589 = vmatmul.f32.gmra.mxu0 %v522
        %v590 = vpop.f32.mrf.mxu0
        %v591 = vadd.f32 %v491, %v590
        %592 = vmatmul.f32.gmra.mxu0 %v525
        %v593 = vpop.f32.mrf.mxu0
        %v594 = vadd.f32 %v491, %v593
        %595 = vmatmul.f32.gmra.mxu0 %v528
        %v596 = vpop.f32.mrf.mxu0
        %v597 = vadd.f32 %v491, %v596
        %598 = vmatmul.f32.gmra.mxu0 %v531
        %v599 = vpop.f32.mrf.mxu0
        %v600 = vadd.f32 %v491, %v599
        %601 = vmatmul.f32.gmra.mxu0 %v534
        %v602 = vpop.f32.mrf.mxu0
        %v603 = vadd.f32 %v491, %v602
        %604 = vmatmul.f32.gmra.mxu0 %v537
        %v605 = vpop.f32.mrf.mxu0
        %v606 = vadd.f32 %v491, %v605
        %607 = vmatmul.f32.gmra.mxu0 %v540
        %v608 = vpop.f32.mrf.mxu0
        %v609 = vadd.f32 %v491, %v608
        %610 = vdwg.mxu0
        %vm611 = vcmask 785408
        %612 = vst.msk [vmem:[#allocation2] sm:$0xff] %vm611, %v564
        %613 = vst.msk [vmem:[#allocation2 + $0x8] sm:$0xff] %vm611, %v567
        %614 = vst.msk [vmem:[#allocation2 + $0x10] sm:$0xff] %vm611, %v570
        %615 = vst.msk [vmem:[#allocation2 + $0x18] sm:$0xff] %vm611, %v573
        %616 = vst.msk [vmem:[#allocation2 + $0x20] sm:$0xff] %vm611, %v576
        %617 = vst.msk [vmem:[#allocation2 + $0x28] sm:$0xff] %vm611, %v579
        %618 = vst.msk [vmem:[#allocation2 + $0x30] sm:$0xff] %vm611, %v582
        %619 = vst.msk [vmem:[#allocation2 + $0x38] sm:$0xff] %vm611, %v585
        %620 = vst.msk [vmem:[#allocation2 + $0x40] sm:$0xff] %vm611, %v588
        %621 = vst.msk [vmem:[#allocation2 + $0x48] sm:$0xff] %vm611, %v591
        %622 = vst.msk [vmem:[#allocation2 + $0x50] sm:$0xff] %vm611, %v594
        %623 = vst.msk [vmem:[#allocation2 + $0x58] sm:$0xff] %vm611, %v597
        %624 = vst.msk [vmem:[#allocation2 + $0x60] sm:$0xff] %vm611, %v600
        %625 = vst.msk [vmem:[#allocation2 + $0x68] sm:$0xff] %vm611, %v603
        %626 = vst.msk [vmem:[#allocation2 + $0x70] sm:$0xff] %vm611, %v606
        %627 = vst.msk [vmem:[#allocation2 + $0x78] sm:$0xff] %vm611, %v609
        %v628 = vld [vmem:[%s3] sm:$0xff]
        %v629 = vld [vmem:[%s3 + $0x8] sm:$0xff]
        %v630 = vld [vmem:[%s3 + $0x10] sm:$0xff]
        %v631 = vld [vmem:[%s3 + $0x18] sm:$0xff]
        %v632 = vld [vmem:[#allocation2] sm:$0xff]
        %vm633 = vcmask 261120
        %v635 = vsel %vm633, 0.0, 0
        %637 = vmatpush.msra.mxu0 0.0
        %638 = vmatpush.msra.mxu0 0.0
        %639 = vmatpush.msra.mxu0 0.0
        %640 = vmatpush.msra.mxu0 0.0
        %641 = vmatpush.msra.mxu0 0.0
        %642 = vmatpush.msra.mxu0 0.0
        %643 = vmatpush.msra.mxu0 0.0
        %644 = vmatpush.msra.mxu0 0.0
        %645 = vmatpush.msra.mxu0 0.0
        %646 = vmatpush.msra.mxu0 0.0
        %647 = vmatpush.msra.mxu0 0.0
        %648 = vmatpush.msra.mxu0 0.0
        %649 = vmatpush.msra.mxu0 %v631
        %650 = vmatpush.msra.mxu0 %v630
        %651 = vmatpush.msra.mxu0 %v629
        %652 = vmatpush.msra.mxu0 %v628
        %653 = vmatmul.f32.gmra.mxu0 %v635
        %v654 = vpop.f32.mrf.mxu0
        %v655 = vadd.f32 %v632, %v654
        %656 = vdwg.mxu0
        %v657 = vxor.u32 %v655, 2147483648
        %v658 = vmul.f32 %v657, 1.442695
        %v659 = vpow.pop %v658
        %v660 = vadd.f32 %v659, 1.0
        %v661 = vrcp.pop %v660
        %v662 = vmul.f32 %v660, %v661
        %v663 = vsub.f32 1.0, %v662
        %v664 = vmul.f32 %v661, %v663
        %v665 = vadd.f32 %v661, %v664
        %vm666 = vweird.f32 %v660
        %vm667 = vweird.f32 %v661
        %vm668 = vmor %vm666, %vm667
        %v669 = vsel %vm668, %v661, %v665
        %v670 = vand.u32 2147483647, %v660
        %vm671 = vcmp.eq.f32.partialorder %v670, 8.507059e+37
        %v672 = vand.u32 %v660, 2147483648
        %v673 = vor.u32 1.1754944e-38, %v672
        %v674 = vsel %vm671, %v673, %v669
        %v675 = vmul.f32 1.0, %v674
        %v676 = vtanh.pop %v655
        %v677 = vmul.f32 %v675, 0.0
        %679 = vrot.lane.b32.xlu0 %v676, 64
        %v680 = vpop.permute.xlu0 %679
        %v682 = vmul.f32 %v471, %v680
        %v683 = vadd.f32 %v677, %v682
        %v684 = vtanh.pop %v683
        %686 = vrot.lane.b32.xlu0 %v684, 32
        %v687 = vpop.permute.xlu0 %686
        %v689 = vmul.f32 %v675, %v687
        %691 = vrot.lane.b32.xlu0 %v689, 96
        %v692 = vpop.permute.xlu0 %691
        %694 = vst.msk [vmem:[%s408] sm:$0xff] %vm633, %v692
        %695 = vst.msk [vmem:[%s414] sm:$0xff] %vm633, %v683
        %s696 = scalar_lea.vmem [#allocation2], 8
        %v697 = vld [vmem:[%s696] sm:$0xff]
        %v698 = vsel %vm633, %v692, 0
        %700 = vmatpush.msra.mxu0 0.0
        %701 = vmatpush.msra.mxu0 0.0
        %702 = vmatpush.msra.mxu0 0.0
        %703 = vmatpush.msra.mxu0 0.0
        %704 = vmatpush.msra.mxu0 0.0
        %705 = vmatpush.msra.mxu0 0.0
        %706 = vmatpush.msra.mxu0 0.0
        %707 = vmatpush.msra.mxu0 0.0
        %708 = vmatpush.msra.mxu0 0.0
        %709 = vmatpush.msra.mxu0 0.0
        %710 = vmatpush.msra.mxu0 0.0
        %711 = vmatpush.msra.mxu0 0.0
        %712 = vmatpush.msra.mxu0 %v631
        %713 = vmatpush.msra.mxu0 %v630
        %714 = vmatpush.msra.mxu0 %v629
        %715 = vmatpush.msra.mxu0 %v628
        %716 = vmatmul.f32.gmra.mxu0 %v698
        %v717 = vpop.f32.mrf.mxu0
        %v718 = vadd.f32 %v697, %v717
        %719 = vdwg.mxu0
        %v720 = vxor.u32 %v718, 2147483648
        %v721 = vmul.f32 %v720, 1.442695
        %v722 = vpow.pop %v721
        %v723 = vadd.f32 %v722, 1.0
        %v724 = vrcp.pop %v723
        %v725 = vmul.f32 %v723, %v724
        %v726 = vsub.f32 1.0, %v725
        %v727 = vmul.f32 %v724, %v726
        %v728 = vadd.f32 %v724, %v727
        %vm729 = vweird.f32 %v723
        %vm730 = vweird.f32 %v724
        %vm731 = vmor %vm729, %vm730
        %v732 = vsel %vm731, %v724, %v728
        %v733 = vand.u32 2147483647, %v723
        %vm734 = vcmp.eq.f32.partialorder %v733, 8.507059e+37
        %v735 = vand.u32 %v723, 2147483648
        %v736 = vor.u32 1.1754944e-38, %v735
        %v737 = vsel %vm734, %v736, %v732
        %v738 = vmul.f32 1.0, %v737
        %v739 = vtanh.pop %v718
        %v740 = vmul.f32 %v738, %v683
        %742 = vrot.lane.b32.xlu0 %v739, 64
        %v743 = vpop.permute.xlu0 %742
        %v745 = vmul.f32 %v471, %v743
        %v746 = vadd.f32 %v740, %v745
        %v747 = vtanh.pop %v746
        %749 = vrot.lane.b32.xlu0 %v747, 32
        %v750 = vpop.permute.xlu0 %749
        %v752 = vmul.f32 %v738, %v750
        %754 = vrot.lane.b32.xlu0 %v752, 96
        %v755 = vpop.permute.xlu0 %754
        %s757 = scalar_lea.vmem %s408, 8 [#allocation4]
        %758 = vst.msk [vmem:[%s757] sm:$0xff] %vm633, %v755
        %s759 = scalar_lea.vmem %s414, 8 [#allocation5]
        %760 = vst.msk [vmem:[%s759] sm:$0xff] %vm633, %v746
        %s761 = scalar_lea.vmem [#allocation2], 16
        %v762 = vld [vmem:[%s761] sm:$0xff]
        %v763 = vsel %vm633, %v755, 0
        %765 = vmatpush.msra.mxu0 0.0
        %766 = vmatpush.msra.mxu0 0.0
        %767 = vmatpush.msra.mxu0 0.0
        %768 = vmatpush.msra.mxu0 0.0
        %769 = vmatpush.msra.mxu0 0.0
        %770 = vmatpush.msra.mxu0 0.0
        %771 = vmatpush.msra.mxu0 0.0
        %772 = vmatpush.msra.mxu0 0.0
        %773 = vmatpush.msra.mxu0 0.0
        %774 = vmatpush.msra.mxu0 0.0
        %775 = vmatpush.msra.mxu0 0.0
        %776 = vmatpush.msra.mxu0 0.0
        %777 = vmatpush.msra.mxu0 %v631
        %778 = vmatpush.msra.mxu0 %v630
        %779 = vmatpush.msra.mxu0 %v629
        %780 = vmatpush.msra.mxu0 %v628
        %781 = vmatmul.f32.gmra.mxu0 %v763
        %v782 = vpop.f32.mrf.mxu0
        %v783 = vadd.f32 %v762, %v782
        %784 = vdwg.mxu0
        %v785 = vxor.u32 %v783, 2147483648
        %v786 = vmul.f32 %v785, 1.442695
        %v787 = vpow.pop %v786
        %v788 = vadd.f32 %v787, 1.0
        %v789 = vrcp.pop %v788
        %v790 = vmul.f32 %v788, %v789
        %v791 = vsub.f32 1.0, %v790
        %v792 = vmul.f32 %v789, %v791
        %v793 = vadd.f32 %v789, %v792
        %vm794 = vweird.f32 %v788
        %vm795 = vweird.f32 %v789
        %vm796 = vmor %vm794, %vm795
        %v797 = vsel %vm796, %v789, %v793
        %v798 = vand.u32 2147483647, %v788
        %vm799 = vcmp.eq.f32.partialorder %v798, 8.507059e+37
        %v800 = vand.u32 %v788, 2147483648
        %v801 = vor.u32 1.1754944e-38, %v800
        %v802 = vsel %vm799, %v801, %v797
        %v803 = vmul.f32 1.0, %v802
        %v804 = vtanh.pop %v783
        %v805 = vmul.f32 %v803, %v746
        %807 = vrot.lane.b32.xlu0 %v804, 64
        %v808 = vpop.permute.xlu0 %807
        %v810 = vmul.f32 %v471, %v808
        %v811 = vadd.f32 %v805, %v810
        %v812 = vtanh.pop %v811
        %814 = vrot.lane.b32.xlu0 %v812, 32
        %v815 = vpop.permute.xlu0 %814
        %v817 = vmul.f32 %v803, %v815
        %819 = vrot.lane.b32.xlu0 %v817, 96
        %v820 = vpop.permute.xlu0 %819
        %s822 = scalar_lea.vmem %s408, 16 [#allocation4]
        %823 = vst.msk [vmem:[%s822] sm:$0xff] %vm633, %v820
        %s824 = scalar_lea.vmem %s414, 16 [#allocation5]
        %825 = vst.msk [vmem:[%s824] sm:$0xff] %vm633, %v811
        %s826 = scalar_lea.vmem [#allocation2], 24
        %v827 = vld [vmem:[%s826] sm:$0xff]
        %v828 = vsel %vm633, %v820, 0
        %830 = vmatpush.msra.mxu0 0.0
        %831 = vmatpush.msra.mxu0 0.0
        %832 = vmatpush.msra.mxu0 0.0
        %833 = vmatpush.msra.mxu0 0.0
        %834 = vmatpush.msra.mxu0 0.0
        %835 = vmatpush.msra.mxu0 0.0
        %836 = vmatpush.msra.mxu0 0.0
        %837 = vmatpush.msra.mxu0 0.0
        %838 = vmatpush.msra.mxu0 0.0
        %839 = vmatpush.msra.mxu0 0.0
        %840 = vmatpush.msra.mxu0 0.0
        %841 = vmatpush.msra.mxu0 0.0
        %842 = vmatpush.msra.mxu0 %v631
        %843 = vmatpush.msra.mxu0 %v630
        %844 = vmatpush.msra.mxu0 %v629
        %845 = vmatpush.msra.mxu0 %v628
        %846 = vmatmul.f32.gmra.mxu0 %v828
        %v847 = vpop.f32.mrf.mxu0
        %v848 = vadd.f32 %v827, %v847
        %849 = vdwg.mxu0
        %v850 = vxor.u32 %v848, 2147483648
        %v851 = vmul.f32 %v850, 1.442695
        %v852 = vpow.pop %v851
        %v853 = vadd.f32 %v852, 1.0
        %v854 = vrcp.pop %v853
        %v855 = vmul.f32 %v853, %v854
        %v856 = vsub.f32 1.0, %v855
        %v857 = vmul.f32 %v854, %v856
        %v858 = vadd.f32 %v854, %v857
        %vm859 = vweird.f32 %v853
        %vm860 = vweird.f32 %v854
        %vm861 = vmor %vm859, %vm860
        %v862 = vsel %vm861, %v854, %v858
        %v863 = vand.u32 2147483647, %v853
        %vm864 = vcmp.eq.f32.partialorder %v863, 8.507059e+37
        %v865 = vand.u32 %v853, 2147483648
        %v866 = vor.u32 1.1754944e-38, %v865
        %v867 = vsel %vm864, %v866, %v862
        %v868 = vmul.f32 1.0, %v867
        %v869 = vtanh.pop %v848
        %v870 = vmul.f32 %v868, %v811
        %872 = vrot.lane.b32.xlu0 %v869, 64
        %v873 = vpop.permute.xlu0 %872
        %v875 = vmul.f32 %v471, %v873
        %v876 = vadd.f32 %v870, %v875
        %v877 = vtanh.pop %v876
        %879 = vrot.lane.b32.xlu0 %v877, 32
        %v880 = vpop.permute.xlu0 %879
        %v882 = vmul.f32 %v868, %v880
        %884 = vrot.lane.b32.xlu0 %v882, 96
        %v885 = vpop.permute.xlu0 %884
        %s887 = scalar_lea.vmem %s408, 24 [#allocation4]
        %888 = vst.msk [vmem:[%s887] sm:$0xff] %vm633, %v885
        %s889 = scalar_lea.vmem %s414, 24 [#allocation5]
        %890 = vst.msk [vmem:[%s889] sm:$0xff] %vm633, %v876
        %s891 = scalar_lea.vmem [#allocation2], 32
        %v892 = vld [vmem:[%s891] sm:$0xff]
        %v893 = vsel %vm633, %v885, 0
        %895 = vmatpush.msra.mxu0 0.0
        %896 = vmatpush.msra.mxu0 0.0
        %897 = vmatpush.msra.mxu0 0.0
        %898 = vmatpush.msra.mxu0 0.0
        %899 = vmatpush.msra.mxu0 0.0
        %900 = vmatpush.msra.mxu0 0.0
        %901 = vmatpush.msra.mxu0 0.0
        %902 = vmatpush.msra.mxu0 0.0
        %903 = vmatpush.msra.mxu0 0.0
        %904 = vmatpush.msra.mxu0 0.0
        %905 = vmatpush.msra.mxu0 0.0
        %906 = vmatpush.msra.mxu0 0.0
        %907 = vmatpush.msra.mxu0 %v631
        %908 = vmatpush.msra.mxu0 %v630
        %909 = vmatpush.msra.mxu0 %v629
        %910 = vmatpush.msra.mxu0 %v628
        %911 = vmatmul.f32.gmra.mxu0 %v893
        %v912 = vpop.f32.mrf.mxu0
        %v913 = vadd.f32 %v892, %v912
        %914 = vdwg.mxu0
        %v915 = vxor.u32 %v913, 2147483648
        %v916 = vmul.f32 %v915, 1.442695
        %v917 = vpow.pop %v916
        %v918 = vadd.f32 %v917, 1.0
        %v919 = vrcp.pop %v918
        %v920 = vmul.f32 %v918, %v919
        %v921 = vsub.f32 1.0, %v920
        %v922 = vmul.f32 %v919, %v921
        %v923 = vadd.f32 %v919, %v922
        %vm924 = vweird.f32 %v918
        %vm925 = vweird.f32 %v919
        %vm926 = vmor %vm924, %vm925
        %v927 = vsel %vm926, %v919, %v923
        %v928 = vand.u32 2147483647, %v918
        %vm929 = vcmp.eq.f32.partialorder %v928, 8.507059e+37
        %v930 = vand.u32 %v918, 2147483648
        %v931 = vor.u32 1.1754944e-38, %v930
        %v932 = vsel %vm929, %v931, %v927
        %v933 = vmul.f32 1.0, %v932
        %v934 = vtanh.pop %v913
        %v935 = vmul.f32 %v933, %v876
        %937 = vrot.lane.b32.xlu0 %v934, 64
        %v938 = vpop.permute.xlu0 %937
        %v940 = vmul.f32 %v471, %v938
        %v941 = vadd.f32 %v935, %v940
        %v942 = vtanh.pop %v941
        %944 = vrot.lane.b32.xlu0 %v942, 32
        %v945 = vpop.permute.xlu0 %944
        %v947 = vmul.f32 %v933, %v945
        %949 = vrot.lane.b32.xlu0 %v947, 96
        %v950 = vpop.permute.xlu0 %949
        %s952 = scalar_lea.vmem %s408, 32 [#allocation4]
        %953 = vst.msk [vmem:[%s952] sm:$0xff] %vm633, %v950
        %s954 = scalar_lea.vmem %s414, 32 [#allocation5]
        %955 = vst.msk [vmem:[%s954] sm:$0xff] %vm633, %v941
        %s956 = scalar_lea.vmem [#allocation2], 40
        %v957 = vld [vmem:[%s956] sm:$0xff]
        %v958 = vsel %vm633, %v950, 0
        %960 = vmatpush.msra.mxu0 0.0
        %961 = vmatpush.msra.mxu0 0.0
        %962 = vmatpush.msra.mxu0 0.0
        %963 = vmatpush.msra.mxu0 0.0
        %964 = vmatpush.msra.mxu0 0.0
        %965 = vmatpush.msra.mxu0 0.0
        %966 = vmatpush.msra.mxu0 0.0
        %967 = vmatpush.msra.mxu0 0.0
        %968 = vmatpush.msra.mxu0 0.0
        %969 = vmatpush.msra.mxu0 0.0
        %970 = vmatpush.msra.mxu0 0.0
        %971 = vmatpush.msra.mxu0 0.0
        %972 = vmatpush.msra.mxu0 %v631
        %973 = vmatpush.msra.mxu0 %v630
        %974 = vmatpush.msra.mxu0 %v629
        %975 = vmatpush.msra.mxu0 %v628
        %976 = vmatmul.f32.gmra.mxu0 %v958
        %v977 = vpop.f32.mrf.mxu0
        %v978 = vadd.f32 %v957, %v977
        %979 = vdwg.mxu0
        %v980 = vxor.u32 %v978, 2147483648
        %v981 = vmul.f32 %v980, 1.442695
        %v982 = vpow.pop %v981
        %v983 = vadd.f32 %v982, 1.0
        %v984 = vrcp.pop %v983
        %v985 = vmul.f32 %v983, %v984
        %v986 = vsub.f32 1.0, %v985
        %v987 = vmul.f32 %v984, %v986
        %v988 = vadd.f32 %v984, %v987
        %vm989 = vweird.f32 %v983
        %vm990 = vweird.f32 %v984
        %vm991 = vmor %vm989, %vm990
        %v992 = vsel %vm991, %v984, %v988
        %v993 = vand.u32 2147483647, %v983
        %vm994 = vcmp.eq.f32.partialorder %v993, 8.507059e+37
        %v995 = vand.u32 %v983, 2147483648
        %v996 = vor.u32 1.1754944e-38, %v995
        %v997 = vsel %vm994, %v996, %v992
        %v998 = vmul.f32 1.0, %v997
        %v999 = vtanh.pop %v978
        %v1000 = vmul.f32 %v998, %v941
        %1002 = vrot.lane.b32.xlu0 %v999, 64
        %v1003 = vpop.permute.xlu0 %1002
        %v1005 = vmul.f32 %v471, %v1003
        %v1006 = vadd.f32 %v1000, %v1005
        %v1007 = vtanh.pop %v1006
        %1009 = vrot.lane.b32.xlu0 %v1007, 32
        %v1010 = vpop.permute.xlu0 %1009
        %v1012 = vmul.f32 %v998, %v1010
        %1014 = vrot.lane.b32.xlu0 %v1012, 96
        %v1015 = vpop.permute.xlu0 %1014
        %s1017 = scalar_lea.vmem %s408, 40 [#allocation4]
        %1018 = vst.msk [vmem:[%s1017] sm:$0xff] %vm633, %v1015
        %s1019 = scalar_lea.vmem %s414, 40 [#allocation5]
        %1020 = vst.msk [vmem:[%s1019] sm:$0xff] %vm633, %v1006
        %s1021 = scalar_lea.vmem [#allocation2], 48
        %v1022 = vld [vmem:[%s1021] sm:$0xff]
        %v1023 = vsel %vm633, %v1015, 0
        %1025 = vmatpush.msra.mxu0 0.0
        %1026 = vmatpush.msra.mxu0 0.0
        %1027 = vmatpush.msra.mxu0 0.0
        %1028 = vmatpush.msra.mxu0 0.0
        %1029 = vmatpush.msra.mxu0 0.0
        %1030 = vmatpush.msra.mxu0 0.0
        %1031 = vmatpush.msra.mxu0 0.0
        %1032 = vmatpush.msra.mxu0 0.0
        %1033 = vmatpush.msra.mxu0 0.0
        %1034 = vmatpush.msra.mxu0 0.0
        %1035 = vmatpush.msra.mxu0 0.0
        %1036 = vmatpush.msra.mxu0 0.0
        %1037 = vmatpush.msra.mxu0 %v631
        %1038 = vmatpush.msra.mxu0 %v630
        %1039 = vmatpush.msra.mxu0 %v629
        %1040 = vmatpush.msra.mxu0 %v628
        %1041 = vmatmul.f32.gmra.mxu0 %v1023
        %v1042 = vpop.f32.mrf.mxu0
        %v1043 = vadd.f32 %v1022, %v1042
        %1044 = vdwg.mxu0
        %v1045 = vxor.u32 %v1043, 2147483648
        %v1046 = vmul.f32 %v1045, 1.442695
        %v1047 = vpow.pop %v1046
        %v1048 = vadd.f32 %v1047, 1.0
        %v1049 = vrcp.pop %v1048
        %v1050 = vmul.f32 %v1048, %v1049
        %v1051 = vsub.f32 1.0, %v1050
        %v1052 = vmul.f32 %v1049, %v1051
        %v1053 = vadd.f32 %v1049, %v1052
        %vm1054 = vweird.f32 %v1048
        %vm1055 = vweird.f32 %v1049
        %vm1056 = vmor %vm1054, %vm1055
        %v1057 = vsel %vm1056, %v1049, %v1053
        %v1058 = vand.u32 2147483647, %v1048
        %vm1059 = vcmp.eq.f32.partialorder %v1058, 8.507059e+37
        %v1060 = vand.u32 %v1048, 2147483648
        %v1061 = vor.u32 1.1754944e-38, %v1060
        %v1062 = vsel %vm1059, %v1061, %v1057
        %v1063 = vmul.f32 1.0, %v1062
        %v1064 = vtanh.pop %v1043
        %v1065 = vmul.f32 %v1063, %v1006
        %1067 = vrot.lane.b32.xlu0 %v1064, 64
        %v1068 = vpop.permute.xlu0 %1067
        %v1070 = vmul.f32 %v471, %v1068
        %v1071 = vadd.f32 %v1065, %v1070
        %v1072 = vtanh.pop %v1071
        %1074 = vrot.lane.b32.xlu0 %v1072, 32
        %v1075 = vpop.permute.xlu0 %1074
        %v1077 = vmul.f32 %v1063, %v1075
        %1079 = vrot.lane.b32.xlu0 %v1077, 96
        %v1080 = vpop.permute.xlu0 %1079
        %s1082 = scalar_lea.vmem %s408, 48 [#allocation4]
        %1083 = vst.msk [vmem:[%s1082] sm:$0xff] %vm633, %v1080
        %s1084 = scalar_lea.vmem %s414, 48 [#allocation5]
        %1085 = vst.msk [vmem:[%s1084] sm:$0xff] %vm633, %v1071
        %s1086 = scalar_lea.vmem [#allocation2], 56
        %v1087 = vld [vmem:[%s1086] sm:$0xff]
        %v1088 = vsel %vm633, %v1080, 0
        %1090 = vmatpush.msra.mxu0 0.0
        %1091 = vmatpush.msra.mxu0 0.0
        %1092 = vmatpush.msra.mxu0 0.0
        %1093 = vmatpush.msra.mxu0 0.0
        %1094 = vmatpush.msra.mxu0 0.0
        %1095 = vmatpush.msra.mxu0 0.0
        %1096 = vmatpush.msra.mxu0 0.0
        %1097 = vmatpush.msra.mxu0 0.0
        %1098 = vmatpush.msra.mxu0 0.0
        %1099 = vmatpush.msra.mxu0 0.0
        %1100 = vmatpush.msra.mxu0 0.0
        %1101 = vmatpush.msra.mxu0 0.0
        %1102 = vmatpush.msra.mxu0 %v631
        %1103 = vmatpush.msra.mxu0 %v630
        %1104 = vmatpush.msra.mxu0 %v629
        %1105 = vmatpush.msra.mxu0 %v628
        %1106 = vmatmul.f32.gmra.mxu0 %v1088
        %v1107 = vpop.f32.mrf.mxu0
        %v1108 = vadd.f32 %v1087, %v1107
        %1109 = vdwg.mxu0
        %v1110 = vxor.u32 %v1108, 2147483648
        %v1111 = vmul.f32 %v1110, 1.442695
        %v1112 = vpow.pop %v1111
        %v1113 = vadd.f32 %v1112, 1.0
        %v1114 = vrcp.pop %v1113
        %v1115 = vmul.f32 %v1113, %v1114
        %v1116 = vsub.f32 1.0, %v1115
        %v1117 = vmul.f32 %v1114, %v1116
        %v1118 = vadd.f32 %v1114, %v1117
        %vm1119 = vweird.f32 %v1113
        %vm1120 = vweird.f32 %v1114
        %vm1121 = vmor %vm1119, %vm1120
        %v1122 = vsel %vm1121, %v1114, %v1118
        %v1123 = vand.u32 2147483647, %v1113
        %vm1124 = vcmp.eq.f32.partialorder %v1123, 8.507059e+37
        %v1125 = vand.u32 %v1113, 2147483648
        %v1126 = vor.u32 1.1754944e-38, %v1125
        %v1127 = vsel %vm1124, %v1126, %v1122
        %v1128 = vmul.f32 1.0, %v1127
        %v1129 = vtanh.pop %v1108
        %v1130 = vmul.f32 %v1128, %v1071
        %1132 = vrot.lane.b32.xlu0 %v1129, 64
        %v1133 = vpop.permute.xlu0 %1132
        %v1135 = vmul.f32 %v471, %v1133
        %v1136 = vadd.f32 %v1130, %v1135
        %v1137 = vtanh.pop %v1136
        %1139 = vrot.lane.b32.xlu0 %v1137, 32
        %v1140 = vpop.permute.xlu0 %1139
        %v1142 = vmul.f32 %v1128, %v1140
        %1144 = vrot.lane.b32.xlu0 %v1142, 96
        %v1145 = vpop.permute.xlu0 %1144
        %s1147 = scalar_lea.vmem %s408, 56 [#allocation4]
        %1148 = vst.msk [vmem:[%s1147] sm:$0xff] %vm633, %v1145
        %s1149 = scalar_lea.vmem %s414, 56 [#allocation5]
        %1150 = vst.msk [vmem:[%s1149] sm:$0xff] %vm633, %v1136
        %s1151 = scalar_lea.vmem [#allocation2], 64
        %v1152 = vld [vmem:[%s1151] sm:$0xff]
        %v1153 = vsel %vm633, %v1145, 0
        %1155 = vmatpush.msra.mxu0 0.0
        %1156 = vmatpush.msra.mxu0 0.0
        %1157 = vmatpush.msra.mxu0 0.0
        %1158 = vmatpush.msra.mxu0 0.0
        %1159 = vmatpush.msra.mxu0 0.0
        %1160 = vmatpush.msra.mxu0 0.0
        %1161 = vmatpush.msra.mxu0 0.0
        %1162 = vmatpush.msra.mxu0 0.0
        %1163 = vmatpush.msra.mxu0 0.0
        %1164 = vmatpush.msra.mxu0 0.0
        %1165 = vmatpush.msra.mxu0 0.0
        %1166 = vmatpush.msra.mxu0 0.0
        %1167 = vmatpush.msra.mxu0 %v631
        %1168 = vmatpush.msra.mxu0 %v630
        %1169 = vmatpush.msra.mxu0 %v629
        %1170 = vmatpush.msra.mxu0 %v628
        %1171 = vmatmul.f32.gmra.mxu0 %v1153
        %v1172 = vpop.f32.mrf.mxu0
        %v1173 = vadd.f32 %v1152, %v1172
        %1174 = vdwg.mxu0
        %v1175 = vxor.u32 %v1173, 2147483648
        %v1176 = vmul.f32 %v1175, 1.442695
        %v1177 = vpow.pop %v1176
        %v1178 = vadd.f32 %v1177, 1.0
        %v1179 = vrcp.pop %v1178
        %v1180 = vmul.f32 %v1178, %v1179
        %v1181 = vsub.f32 1.0, %v1180
        %v1182 = vmul.f32 %v1179, %v1181
        %v1183 = vadd.f32 %v1179, %v1182
        %vm1184 = vweird.f32 %v1178
        %vm1185 = vweird.f32 %v1179
        %vm1186 = vmor %vm1184, %vm1185
        %v1187 = vsel %vm1186, %v1179, %v1183
        %v1188 = vand.u32 2147483647, %v1178
        %vm1189 = vcmp.eq.f32.partialorder %v1188, 8.507059e+37
        %v1190 = vand.u32 %v1178, 2147483648
        %v1191 = vor.u32 1.1754944e-38, %v1190
        %v1192 = vsel %vm1189, %v1191, %v1187
        %v1193 = vmul.f32 1.0, %v1192
        %v1194 = vtanh.pop %v1173
        %v1195 = vmul.f32 %v1193, %v1136
        %1197 = vrot.lane.b32.xlu0 %v1194, 64
        %v1198 = vpop.permute.xlu0 %1197
        %v1200 = vmul.f32 %v471, %v1198
        %v1201 = vadd.f32 %v1195, %v1200
        %v1202 = vtanh.pop %v1201
        %1204 = vrot.lane.b32.xlu0 %v1202, 32
        %v1205 = vpop.permute.xlu0 %1204
        %v1207 = vmul.f32 %v1193, %v1205
        %1209 = vrot.lane.b32.xlu0 %v1207, 96
        %v1210 = vpop.permute.xlu0 %1209
        %s1212 = scalar_lea.vmem %s408, 64 [#allocation4]
        %1213 = vst.msk [vmem:[%s1212] sm:$0xff] %vm633, %v1210
        %s1214 = scalar_lea.vmem %s414, 64 [#allocation5]
        %1215 = vst.msk [vmem:[%s1214] sm:$0xff] %vm633, %v1201
        %s1216 = scalar_lea.vmem [#allocation2], 72
        %v1217 = vld [vmem:[%s1216] sm:$0xff]
        %v1218 = vsel %vm633, %v1210, 0
        %1220 = vmatpush.msra.mxu0 0.0
        %1221 = vmatpush.msra.mxu0 0.0
        %1222 = vmatpush.msra.mxu0 0.0
        %1223 = vmatpush.msra.mxu0 0.0
        %1224 = vmatpush.msra.mxu0 0.0
        %1225 = vmatpush.msra.mxu0 0.0
        %1226 = vmatpush.msra.mxu0 0.0
        %1227 = vmatpush.msra.mxu0 0.0
        %1228 = vmatpush.msra.mxu0 0.0
        %1229 = vmatpush.msra.mxu0 0.0
        %1230 = vmatpush.msra.mxu0 0.0
        %1231 = vmatpush.msra.mxu0 0.0
        %1232 = vmatpush.msra.mxu0 %v631
        %1233 = vmatpush.msra.mxu0 %v630
        %1234 = vmatpush.msra.mxu0 %v629
        %1235 = vmatpush.msra.mxu0 %v628
        %1236 = vmatmul.f32.gmra.mxu0 %v1218
        %v1237 = vpop.f32.mrf.mxu0
        %v1238 = vadd.f32 %v1217, %v1237
        %1239 = vdwg.mxu0
        %v1240 = vxor.u32 %v1238, 2147483648
        %v1241 = vmul.f32 %v1240, 1.442695
        %v1242 = vpow.pop %v1241
        %v1243 = vadd.f32 %v1242, 1.0
        %v1244 = vrcp.pop %v1243
        %v1245 = vmul.f32 %v1243, %v1244
        %v1246 = vsub.f32 1.0, %v1245
        %v1247 = vmul.f32 %v1244, %v1246
        %v1248 = vadd.f32 %v1244, %v1247
        %vm1249 = vweird.f32 %v1243
        %vm1250 = vweird.f32 %v1244
        %vm1251 = vmor %vm1249, %vm1250
        %v1252 = vsel %vm1251, %v1244, %v1248
        %v1253 = vand.u32 2147483647, %v1243
        %vm1254 = vcmp.eq.f32.partialorder %v1253, 8.507059e+37
        %v1255 = vand.u32 %v1243, 2147483648
        %v1256 = vor.u32 1.1754944e-38, %v1255
        %v1257 = vsel %vm1254, %v1256, %v1252
        %v1258 = vmul.f32 1.0, %v1257
        %v1259 = vtanh.pop %v1238
        %v1260 = vmul.f32 %v1258, %v1201
        %1262 = vrot.lane.b32.xlu0 %v1259, 64
        %v1263 = vpop.permute.xlu0 %1262
        %v1265 = vmul.f32 %v471, %v1263
        %v1266 = vadd.f32 %v1260, %v1265
        %v1267 = vtanh.pop %v1266
        %1269 = vrot.lane.b32.xlu0 %v1267, 32
        %v1270 = vpop.permute.xlu0 %1269
        %v1272 = vmul.f32 %v1258, %v1270
        %1274 = vrot.lane.b32.xlu0 %v1272, 96
        %v1275 = vpop.permute.xlu0 %1274
        %s1277 = scalar_lea.vmem %s408, 72 [#allocation4]
        %1278 = vst.msk [vmem:[%s1277] sm:$0xff] %vm633, %v1275
        %s1279 = scalar_lea.vmem %s414, 72 [#allocation5]
        %1280 = vst.msk [vmem:[%s1279] sm:$0xff] %vm633, %v1266
        %s1281 = scalar_lea.vmem [#allocation2], 80
        %v1282 = vld [vmem:[%s1281] sm:$0xff]
        %v1283 = vsel %vm633, %v1275, 0
        %1285 = vmatpush.msra.mxu0 0.0
        %1286 = vmatpush.msra.mxu0 0.0
        %1287 = vmatpush.msra.mxu0 0.0
        %1288 = vmatpush.msra.mxu0 0.0
        %1289 = vmatpush.msra.mxu0 0.0
        %1290 = vmatpush.msra.mxu0 0.0
        %1291 = vmatpush.msra.mxu0 0.0
        %1292 = vmatpush.msra.mxu0 0.0
        %1293 = vmatpush.msra.mxu0 0.0
        %1294 = vmatpush.msra.mxu0 0.0
        %1295 = vmatpush.msra.mxu0 0.0
        %1296 = vmatpush.msra.mxu0 0.0
        %1297 = vmatpush.msra.mxu0 %v631
        %1298 = vmatpush.msra.mxu0 %v630
        %1299 = vmatpush.msra.mxu0 %v629
        %1300 = vmatpush.msra.mxu0 %v628
        %1301 = vmatmul.f32.gmra.mxu0 %v1283
        %v1302 = vpop.f32.mrf.mxu0
        %v1303 = vadd.f32 %v1282, %v1302
        %1304 = vdwg.mxu0
        %v1305 = vxor.u32 %v1303, 2147483648
        %v1306 = vmul.f32 %v1305, 1.442695
        %v1307 = vpow.pop %v1306
        %v1308 = vadd.f32 %v1307, 1.0
        %v1309 = vrcp.pop %v1308
        %v1310 = vmul.f32 %v1308, %v1309
        %v1311 = vsub.f32 1.0, %v1310
        %v1312 = vmul.f32 %v1309, %v1311
        %v1313 = vadd.f32 %v1309, %v1312
        %vm1314 = vweird.f32 %v1308
        %vm1315 = vweird.f32 %v1309
        %vm1316 = vmor %vm1314, %vm1315
        %v1317 = vsel %vm1316, %v1309, %v1313
        %v1318 = vand.u32 2147483647, %v1308
        %vm1319 = vcmp.eq.f32.partialorder %v1318, 8.507059e+37
        %v1320 = vand.u32 %v1308, 2147483648
        %v1321 = vor.u32 1.1754944e-38, %v1320
        %v1322 = vsel %vm1319, %v1321, %v1317
        %v1323 = vmul.f32 1.0, %v1322
        %v1324 = vtanh.pop %v1303
        %v1325 = vmul.f32 %v1323, %v1266
        %1327 = vrot.lane.b32.xlu0 %v1324, 64
        %v1328 = vpop.permute.xlu0 %1327
        %v1330 = vmul.f32 %v471, %v1328
        %v1331 = vadd.f32 %v1325, %v1330
        %v1332 = vtanh.pop %v1331
        %1334 = vrot.lane.b32.xlu0 %v1332, 32
        %v1335 = vpop.permute.xlu0 %1334
        %v1337 = vmul.f32 %v1323, %v1335
        %1339 = vrot.lane.b32.xlu0 %v1337, 96
        %v1340 = vpop.permute.xlu0 %1339
        %s1342 = scalar_lea.vmem %s408, 80 [#allocation4]
        %1343 = vst.msk [vmem:[%s1342] sm:$0xff] %vm633, %v1340
        %s1344 = scalar_lea.vmem %s414, 80 [#allocation5]
        %1345 = vst.msk [vmem:[%s1344] sm:$0xff] %vm633, %v1331
        %s1346 = scalar_lea.vmem [#allocation2], 88
        %v1347 = vld [vmem:[%s1346] sm:$0xff]
        %v1348 = vsel %vm633, %v1340, 0
        %1350 = vmatpush.msra.mxu0 0.0
        %1351 = vmatpush.msra.mxu0 0.0
        %1352 = vmatpush.msra.mxu0 0.0
        %1353 = vmatpush.msra.mxu0 0.0
        %1354 = vmatpush.msra.mxu0 0.0
        %1355 = vmatpush.msra.mxu0 0.0
        %1356 = vmatpush.msra.mxu0 0.0
        %1357 = vmatpush.msra.mxu0 0.0
        %1358 = vmatpush.msra.mxu0 0.0
        %1359 = vmatpush.msra.mxu0 0.0
        %1360 = vmatpush.msra.mxu0 0.0
        %1361 = vmatpush.msra.mxu0 0.0
        %1362 = vmatpush.msra.mxu0 %v631
        %1363 = vmatpush.msra.mxu0 %v630
        %1364 = vmatpush.msra.mxu0 %v629
        %1365 = vmatpush.msra.mxu0 %v628
        %1366 = vmatmul.f32.gmra.mxu0 %v1348
        %v1367 = vpop.f32.mrf.mxu0
        %v1368 = vadd.f32 %v1347, %v1367
        %1369 = vdwg.mxu0
        %v1370 = vxor.u32 %v1368, 2147483648
        %v1371 = vmul.f32 %v1370, 1.442695
        %v1372 = vpow.pop %v1371
        %v1373 = vadd.f32 %v1372, 1.0
        %v1374 = vrcp.pop %v1373
        %v1375 = vmul.f32 %v1373, %v1374
        %v1376 = vsub.f32 1.0, %v1375
        %v1377 = vmul.f32 %v1374, %v1376
        %v1378 = vadd.f32 %v1374, %v1377
        %vm1379 = vweird.f32 %v1373
        %vm1380 = vweird.f32 %v1374
        %vm1381 = vmor %vm1379, %vm1380
        %v1382 = vsel %vm1381, %v1374, %v1378
        %v1383 = vand.u32 2147483647, %v1373
        %vm1384 = vcmp.eq.f32.partialorder %v1383, 8.507059e+37
        %v1385 = vand.u32 %v1373, 2147483648
        %v1386 = vor.u32 1.1754944e-38, %v1385
        %v1387 = vsel %vm1384, %v1386, %v1382
        %v1388 = vmul.f32 1.0, %v1387
        %v1389 = vtanh.pop %v1368
        %v1390 = vmul.f32 %v1388, %v1331
        %1392 = vrot.lane.b32.xlu0 %v1389, 64
        %v1393 = vpop.permute.xlu0 %1392
        %v1395 = vmul.f32 %v471, %v1393
        %v1396 = vadd.f32 %v1390, %v1395
        %v1397 = vtanh.pop %v1396
        %1399 = vrot.lane.b32.xlu0 %v1397, 32
        %v1400 = vpop.permute.xlu0 %1399
        %v1402 = vmul.f32 %v1388, %v1400
        %1404 = vrot.lane.b32.xlu0 %v1402, 96
        %v1405 = vpop.permute.xlu0 %1404
        %s1407 = scalar_lea.vmem %s408, 88 [#allocation4]
        %1408 = vst.msk [vmem:[%s1407] sm:$0xff] %vm633, %v1405
        %s1409 = scalar_lea.vmem %s414, 88 [#allocation5]
        %1410 = vst.msk [vmem:[%s1409] sm:$0xff] %vm633, %v1396
        %s1411 = scalar_lea.vmem [#allocation2], 96
        %v1412 = vld [vmem:[%s1411] sm:$0xff]
        %v1413 = vsel %vm633, %v1405, 0
        %1415 = vmatpush.msra.mxu0 0.0
        %1416 = vmatpush.msra.mxu0 0.0
        %1417 = vmatpush.msra.mxu0 0.0
        %1418 = vmatpush.msra.mxu0 0.0
        %1419 = vmatpush.msra.mxu0 0.0
        %1420 = vmatpush.msra.mxu0 0.0
        %1421 = vmatpush.msra.mxu0 0.0
        %1422 = vmatpush.msra.mxu0 0.0
        %1423 = vmatpush.msra.mxu0 0.0
        %1424 = vmatpush.msra.mxu0 0.0
        %1425 = vmatpush.msra.mxu0 0.0
        %1426 = vmatpush.msra.mxu0 0.0
        %1427 = vmatpush.msra.mxu0 %v631
        %1428 = vmatpush.msra.mxu0 %v630
        %1429 = vmatpush.msra.mxu0 %v629
        %1430 = vmatpush.msra.mxu0 %v628
        %1431 = vmatmul.f32.gmra.mxu0 %v1413
        %v1432 = vpop.f32.mrf.mxu0
        %v1433 = vadd.f32 %v1412, %v1432
        %1434 = vdwg.mxu0
        %v1435 = vxor.u32 %v1433, 2147483648
        %v1436 = vmul.f32 %v1435, 1.442695
        %v1437 = vpow.pop %v1436
        %v1438 = vadd.f32 %v1437, 1.0
        %v1439 = vrcp.pop %v1438
        %v1440 = vmul.f32 %v1438, %v1439
        %v1441 = vsub.f32 1.0, %v1440
        %v1442 = vmul.f32 %v1439, %v1441
        %v1443 = vadd.f32 %v1439, %v1442
        %vm1444 = vweird.f32 %v1438
        %vm1445 = vweird.f32 %v1439
        %vm1446 = vmor %vm1444, %vm1445
        %v1447 = vsel %vm1446, %v1439, %v1443
        %v1448 = vand.u32 2147483647, %v1438
        %vm1449 = vcmp.eq.f32.partialorder %v1448, 8.507059e+37
        %v1450 = vand.u32 %v1438, 2147483648
        %v1451 = vor.u32 1.1754944e-38, %v1450
        %v1452 = vsel %vm1449, %v1451, %v1447
        %v1453 = vmul.f32 1.0, %v1452
        %v1454 = vtanh.pop %v1433
        %v1455 = vmul.f32 %v1453, %v1396
        %1457 = vrot.lane.b32.xlu0 %v1454, 64
        %v1458 = vpop.permute.xlu0 %1457
        %v1460 = vmul.f32 %v471, %v1458
        %v1461 = vadd.f32 %v1455, %v1460
        %v1462 = vtanh.pop %v1461
        %1464 = vrot.lane.b32.xlu0 %v1462, 32
        %v1465 = vpop.permute.xlu0 %1464
        %v1467 = vmul.f32 %v1453, %v1465
        %1469 = vrot.lane.b32.xlu0 %v1467, 96
        %v1470 = vpop.permute.xlu0 %1469
        %s1472 = scalar_lea.vmem %s408, 96 [#allocation4]
        %1473 = vst.msk [vmem:[%s1472] sm:$0xff] %vm633, %v1470
        %s1474 = scalar_lea.vmem %s414, 96 [#allocation5]
        %1475 = vst.msk [vmem:[%s1474] sm:$0xff] %vm633, %v1461
        %s1476 = scalar_lea.vmem [#allocation2], 104
        %v1477 = vld [vmem:[%s1476] sm:$0xff]
        %v1478 = vsel %vm633, %v1470, 0
        %1480 = vmatpush.msra.mxu0 0.0
        %1481 = vmatpush.msra.mxu0 0.0
        %1482 = vmatpush.msra.mxu0 0.0
        %1483 = vmatpush.msra.mxu0 0.0
        %1484 = vmatpush.msra.mxu0 0.0
        %1485 = vmatpush.msra.mxu0 0.0
        %1486 = vmatpush.msra.mxu0 0.0
        %1487 = vmatpush.msra.mxu0 0.0
        %1488 = vmatpush.msra.mxu0 0.0
        %1489 = vmatpush.msra.mxu0 0.0
        %1490 = vmatpush.msra.mxu0 0.0
        %1491 = vmatpush.msra.mxu0 0.0
        %1492 = vmatpush.msra.mxu0 %v631
        %1493 = vmatpush.msra.mxu0 %v630
        %1494 = vmatpush.msra.mxu0 %v629
        %1495 = vmatpush.msra.mxu0 %v628
        %1496 = vmatmul.f32.gmra.mxu0 %v1478
        %v1497 = vpop.f32.mrf.mxu0
        %v1498 = vadd.f32 %v1477, %v1497
        %1499 = vdwg.mxu0
        %v1500 = vxor.u32 %v1498, 2147483648
        %v1501 = vmul.f32 %v1500, 1.442695
        %v1502 = vpow.pop %v1501
        %v1503 = vadd.f32 %v1502, 1.0
        %v1504 = vrcp.pop %v1503
        %v1505 = vmul.f32 %v1503, %v1504
        %v1506 = vsub.f32 1.0, %v1505
        %v1507 = vmul.f32 %v1504, %v1506
        %v1508 = vadd.f32 %v1504, %v1507
        %vm1509 = vweird.f32 %v1503
        %vm1510 = vweird.f32 %v1504
        %vm1511 = vmor %vm1509, %vm1510
        %v1512 = vsel %vm1511, %v1504, %v1508
        %v1513 = vand.u32 2147483647, %v1503
        %vm1514 = vcmp.eq.f32.partialorder %v1513, 8.507059e+37
        %v1515 = vand.u32 %v1503, 2147483648
        %v1516 = vor.u32 1.1754944e-38, %v1515
        %v1517 = vsel %vm1514, %v1516, %v1512
        %v1518 = vmul.f32 1.0, %v1517
        %v1519 = vtanh.pop %v1498
        %v1520 = vmul.f32 %v1518, %v1461
        %1522 = vrot.lane.b32.xlu0 %v1519, 64
        %v1523 = vpop.permute.xlu0 %1522
        %v1525 = vmul.f32 %v471, %v1523
        %v1526 = vadd.f32 %v1520, %v1525
        %v1527 = vtanh.pop %v1526
        %1529 = vrot.lane.b32.xlu0 %v1527, 32
        %v1530 = vpop.permute.xlu0 %1529
        %v1532 = vmul.f32 %v1518, %v1530
        %1534 = vrot.lane.b32.xlu0 %v1532, 96
        %v1535 = vpop.permute.xlu0 %1534
        %s1537 = scalar_lea.vmem %s408, 104 [#allocation4]
        %1538 = vst.msk [vmem:[%s1537] sm:$0xff] %vm633, %v1535
        %s1539 = scalar_lea.vmem %s414, 104 [#allocation5]
        %1540 = vst.msk [vmem:[%s1539] sm:$0xff] %vm633, %v1526
        %s1541 = scalar_lea.vmem [#allocation2], 112
        %v1542 = vld [vmem:[%s1541] sm:$0xff]
        %v1543 = vsel %vm633, %v1535, 0
        %1545 = vmatpush.msra.mxu0 0.0
        %1546 = vmatpush.msra.mxu0 0.0
        %1547 = vmatpush.msra.mxu0 0.0
        %1548 = vmatpush.msra.mxu0 0.0
        %1549 = vmatpush.msra.mxu0 0.0
        %1550 = vmatpush.msra.mxu0 0.0
        %1551 = vmatpush.msra.mxu0 0.0
        %1552 = vmatpush.msra.mxu0 0.0
        %1553 = vmatpush.msra.mxu0 0.0
        %1554 = vmatpush.msra.mxu0 0.0
        %1555 = vmatpush.msra.mxu0 0.0
        %1556 = vmatpush.msra.mxu0 0.0
        %1557 = vmatpush.msra.mxu0 %v631
        %1558 = vmatpush.msra.mxu0 %v630
        %1559 = vmatpush.msra.mxu0 %v629
        %1560 = vmatpush.msra.mxu0 %v628
        %1561 = vmatmul.f32.gmra.mxu0 %v1543
        %v1562 = vpop.f32.mrf.mxu0
        %v1563 = vadd.f32 %v1542, %v1562
        %1564 = vdwg.mxu0
        %v1565 = vxor.u32 %v1563, 2147483648
        %v1566 = vmul.f32 %v1565, 1.442695
        %v1567 = vpow.pop %v1566
        %v1568 = vadd.f32 %v1567, 1.0
        %v1569 = vrcp.pop %v1568
        %v1570 = vmul.f32 %v1568, %v1569
        %v1571 = vsub.f32 1.0, %v1570
        %v1572 = vmul.f32 %v1569, %v1571
        %v1573 = vadd.f32 %v1569, %v1572
        %vm1574 = vweird.f32 %v1568
        %vm1575 = vweird.f32 %v1569
        %vm1576 = vmor %vm1574, %vm1575
        %v1577 = vsel %vm1576, %v1569, %v1573
        %v1578 = vand.u32 2147483647, %v1568
        %vm1579 = vcmp.eq.f32.partialorder %v1578, 8.507059e+37
        %v1580 = vand.u32 %v1568, 2147483648
        %v1581 = vor.u32 1.1754944e-38, %v1580
        %v1582 = vsel %vm1579, %v1581, %v1577
        %v1583 = vmul.f32 1.0, %v1582
        %v1584 = vtanh.pop %v1563
        %v1585 = vmul.f32 %v1583, %v1526
        %1587 = vrot.lane.b32.xlu0 %v1584, 64
        %v1588 = vpop.permute.xlu0 %1587
        %v1590 = vmul.f32 %v471, %v1588
        %v1591 = vadd.f32 %v1585, %v1590
        %v1592 = vtanh.pop %v1591
        %1594 = vrot.lane.b32.xlu0 %v1592, 32
        %v1595 = vpop.permute.xlu0 %1594
        %v1597 = vmul.f32 %v1583, %v1595
        %1599 = vrot.lane.b32.xlu0 %v1597, 96
        %v1600 = vpop.permute.xlu0 %1599
        %s1602 = scalar_lea.vmem %s408, 112 [#allocation4]
        %1603 = vst.msk [vmem:[%s1602] sm:$0xff] %vm633, %v1600
        %s1604 = scalar_lea.vmem %s414, 112 [#allocation5]
        %1605 = vst.msk [vmem:[%s1604] sm:$0xff] %vm633, %v1591
        %s1606 = scalar_lea.vmem [#allocation2], 120
        %v1607 = vld [vmem:[%s1606] sm:$0xff]
        %v1608 = vsel %vm633, %v1600, 0
        %1610 = vmatpush.msra.mxu0 0.0
        %1611 = vmatpush.msra.mxu0 0.0
        %1612 = vmatpush.msra.mxu0 0.0
        %1613 = vmatpush.msra.mxu0 0.0
        %1614 = vmatpush.msra.mxu0 0.0
        %1615 = vmatpush.msra.mxu0 0.0
        %1616 = vmatpush.msra.mxu0 0.0
        %1617 = vmatpush.msra.mxu0 0.0
        %1618 = vmatpush.msra.mxu0 0.0
        %1619 = vmatpush.msra.mxu0 0.0
        %1620 = vmatpush.msra.mxu0 0.0
        %1621 = vmatpush.msra.mxu0 0.0
        %1622 = vmatpush.msra.mxu0 %v631
        %1623 = vmatpush.msra.mxu0 %v630
        %1624 = vmatpush.msra.mxu0 %v629
        %1625 = vmatpush.msra.mxu0 %v628
        %1626 = vmatmul.f32.gmra.mxu0 %v1608
        %v1627 = vpop.f32.mrf.mxu0
        %v1628 = vadd.f32 %v1607, %v1627
        %1629 = vdwg.mxu0
        %v1630 = vxor.u32 %v1628, 2147483648
        %v1631 = vmul.f32 %v1630, 1.442695
        %v1632 = vpow.pop %v1631
        %v1633 = vadd.f32 %v1632, 1.0
        %v1634 = vrcp.pop %v1633
        %v1635 = vmul.f32 %v1633, %v1634
        %v1636 = vsub.f32 1.0, %v1635
        %v1637 = vmul.f32 %v1634, %v1636
        %v1638 = vadd.f32 %v1634, %v1637
        %vm1639 = vweird.f32 %v1633
        %vm1640 = vweird.f32 %v1634
        %vm1641 = vmor %vm1639, %vm1640
        %v1642 = vsel %vm1641, %v1634, %v1638
        %v1643 = vand.u32 2147483647, %v1633
        %vm1644 = vcmp.eq.f32.partialorder %v1643, 8.507059e+37
        %v1645 = vand.u32 %v1633, 2147483648
        %v1646 = vor.u32 1.1754944e-38, %v1645
        %v1647 = vsel %vm1644, %v1646, %v1642
        %v1648 = vmul.f32 1.0, %v1647
        %v1649 = vtanh.pop %v1628
        %v1650 = vmul.f32 %v1648, %v1591
        %1652 = vrot.lane.b32.xlu0 %v1649, 64
        %v1653 = vpop.permute.xlu0 %1652
        %v1655 = vmul.f32 %v471, %v1653
        %v1656 = vadd.f32 %v1650, %v1655
        %v1657 = vtanh.pop %v1656
        %1659 = vrot.lane.b32.xlu0 %v1657, 32
        %v1660 = vpop.permute.xlu0 %1659
        %v1662 = vmul.f32 %v1648, %v1660
        %1664 = vrot.lane.b32.xlu0 %v1662, 96
        %v1665 = vpop.permute.xlu0 %1664
        %s1667 = scalar_lea.vmem %s408, 120 [#allocation4]
        %1668 = vst.msk [vmem:[%s1667] sm:$0xff] %vm633, %v1665
        %s1669 = scalar_lea.vmem %s414, 120 [#allocation5]
        %1670 = vst.msk [vmem:[%s1669] sm:$0xff] %vm633, %v1656
        %s1671 = sand.u32 %s185, 1
        %s1672 = sand.u32 %s185, 1
        %s1673 = smul.addr %s1672, 128
        %s1674 = scalar_lea.vmem [#allocation4], %s1673
        %s1675 = sand.u32 %s211, 1
        %s1676 = sand.u32 %s211, 1
        %s1677 = smul.addr %s1676, 128
        %s1678 = scalar_lea.vmem [#allocation5], %s1677
        // Predicated region
        $region87: #{_ealstm_model_forward_impl.1} parent=81 // pred_check
          %p1679 = pneg %p195
        $region88: #{_ealstm_model_forward_impl.1} parent=81 // pred_check_branch
          %1681 = sbr.rel (%p1679) target = $region90
        $region89: #{_ealstm_model_forward_impl.1} parent=81 // pred_region
          %s1682 = smul.addr %s20, 8
          %s1683 = scalar_lea.vmem %s7, %s1682
          // Predicated region
          $region91: #{_ealstm_model_forward_impl.1} parent=89 // pred_check
            _
          $region92: #{_ealstm_model_forward_impl.1} parent=89 // pred_check_branch
            %1685 = sbr.rel (0) target = $region94
          $region93: #{_ealstm_model_forward_impl.1} parent=89 // pred_region
            // Predicated region
            $region95: #{_ealstm_model_forward_impl.1} parent=93 // pred_check
              _
            $region96: #{_ealstm_model_forward_impl.1} parent=93 // pred_check_branch
              %1687 = sbr.rel (0) target = $region98
            $region97: #{_ealstm_model_forward_impl.1} parent=93 // pred_region
              // Predicated region
              $region110: #{_ealstm_model_forward_impl.1} parent=97 // pred_check
                _
              $region111: #{_ealstm_model_forward_impl.1} parent=97 // pred_check_branch
                %1733 = sbr.rel (0) target = $region113
              $region112: #{_ealstm_model_forward_impl.1} parent=97 // pred_region
                loop: start=0, step=1, limit=1
                $region114: #{_ealstm_model_forward_impl.1} parent=112 // loop_pre_header
                  _
                $region115: #{_ealstm_model_forward_impl.1} parent=112 // loop_header
                  %s1735 = sphi 0, %s1739
                  %p1736 = scmp.ge.s32.totalorder %s1735, 1
                  %s1740 = sphi %s1674, %s1674
                  %s1741 = sphi %s1683, %s1683
                $region116: #{_ealstm_model_forward_impl.1} parent=112 // loop_header_branch
                  %1738 = sbr.rel (%p1736) target = $region120
                $region117: #{_ealstm_model_forward_impl.1} parent=112 // loop_body
                  %v1742 = vld [vmem:[%s1740] sm:$0xff]
                  %1743 = vst [vmem:[%s1741] sm:$0xff] %v1742
                  %v1744 = vld [vmem:[%s1740 + $0x8] sm:$0xff]
                  %1745 = vst [vmem:[%s1741 + $0x10] sm:$0xff] %v1744
                  %v1746 = vld [vmem:[%s1740 + $0x10] sm:$0xff]
                  %1747 = vst [vmem:[%s1741 + $0x20] sm:$0xff] %v1746
                  %v1748 = vld [vmem:[%s1740 + $0x18] sm:$0xff]
                  %1749 = vst [vmem:[%s1741 + $0x30] sm:$0xff] %v1748
                  %v1750 = vld [vmem:[%s1740 + $0x20] sm:$0xff]
                  %1751 = vst [vmem:[%s1741 + $0x40] sm:$0xff] %v1750
                  %v1752 = vld [vmem:[%s1740 + $0x28] sm:$0xff]
                  %1753 = vst [vmem:[%s1741 + $0x50] sm:$0xff] %v1752
                  %v1754 = vld [vmem:[%s1740 + $0x30] sm:$0xff]
                  %1755 = vst [vmem:[%s1741 + $0x60] sm:$0xff] %v1754
                  %v1756 = vld [vmem:[%s1740 + $0x38] sm:$0xff]
                  %1757 = vst [vmem:[%s1741 + $0x70] sm:$0xff] %v1756
                  %v1758 = vld [vmem:[%s1740 + $0x40] sm:$0xff]
                  %1759 = vst [vmem:[%s1741 + $0x80] sm:$0xff] %v1758
                  %v1760 = vld [vmem:[%s1740 + $0x48] sm:$0xff]
                  %1761 = vst [vmem:[%s1741 + $0x90] sm:$0xff] %v1760
                  %v1762 = vld [vmem:[%s1740 + $0x50] sm:$0xff]
                  %1763 = vst [vmem:[%s1741 + $0xa0] sm:$0xff] %v1762
                  %v1764 = vld [vmem:[%s1740 + $0x58] sm:$0xff]
                  %1765 = vst [vmem:[%s1741 + $0xb0] sm:$0xff] %v1764
                  %v1766 = vld [vmem:[%s1740 + $0x60] sm:$0xff]
                  %1767 = vst [vmem:[%s1741 + $0xc0] sm:$0xff] %v1766
                  %v1768 = vld [vmem:[%s1740 + $0x68] sm:$0xff]
                  %1769 = vst [vmem:[%s1741 + $0xd0] sm:$0xff] %v1768
                  %v1770 = vld [vmem:[%s1740 + $0x70] sm:$0xff]
                  %1771 = vst [vmem:[%s1741 + $0xe0] sm:$0xff] %v1770
                  %v1772 = vld [vmem:[%s1740 + $0x78] sm:$0xff]
                  %1773 = vst [vmem:[%s1741 + $0xf0] sm:$0xff] %v1772
                $region118: #{_ealstm_model_forward_impl.1} parent=112 // loop_footer
                  %s1739 = sadd.s32 1, %s1735
                $region119: #{_ealstm_model_forward_impl.1} parent=112 // loop_footer_branch
                  %1734 = sbr.rel target = $region115
                $region120: #{_ealstm_model_forward_impl.1} parent=112 // loop_exit
                  _
              $region113: #{_ealstm_model_forward_impl.1} parent=97 // pred_fallthru
                _
              // Predicated region
              $region121: #{_ealstm_model_forward_impl.1} parent=97 // pred_check
                _
              $region122: #{_ealstm_model_forward_impl.1} parent=97 // pred_check_branch
                %1775 = sbr.rel target = $region124
              $region123: #{_ealstm_model_forward_impl.1} parent=97 // pred_region
                _
              $region124: #{_ealstm_model_forward_impl.1} parent=97 // pred_fallthru
                _
            $region98: #{_ealstm_model_forward_impl.1} parent=93 // pred_fallthru
              _
            // Predicated region
            $region99: #{_ealstm_model_forward_impl.1} parent=93 // pred_check
              _
            $region100: #{_ealstm_model_forward_impl.1} parent=93 // pred_check_branch
              %1689 = sbr.rel target = $region102
            $region101: #{_ealstm_model_forward_impl.1} parent=93 // pred_region
              %s1691 = ssub.s32 256, 1
              loop: start=0, step=1, limit=1
              $region103: #{_ealstm_model_forward_impl.1} parent=101 // loop_pre_header
                _
              $region104: #{_ealstm_model_forward_impl.1} parent=101 // loop_header
                %s1693 = sphi 0, %s1697
                %p1694 = scmp.ge.s32.totalorder %s1693, 1
                %s1698 = sphi %s1674, %s1674
                %s1699 = sphi %s1683, %s1683
              $region105: #{_ealstm_model_forward_impl.1} parent=101 // loop_header_branch
                %1696 = sbr.rel (%p1694) target = $region109
              $region106: #{_ealstm_model_forward_impl.1} parent=101 // loop_body
                %v1700 = vld [vmem:[%s1698] sm:%s1691]
                %1701 = vst [vmem:[%s1699] sm:%s1691] %v1700
                %v1702 = vld [vmem:[%s1698 + $0x8] sm:%s1691]
                %1703 = vst [vmem:[%s1699 + $0x10] sm:%s1691] %v1702
                %v1704 = vld [vmem:[%s1698 + $0x10] sm:%s1691]
                %1705 = vst [vmem:[%s1699 + $0x20] sm:%s1691] %v1704
                %v1706 = vld [vmem:[%s1698 + $0x18] sm:%s1691]
                %1707 = vst [vmem:[%s1699 + $0x30] sm:%s1691] %v1706
                %v1708 = vld [vmem:[%s1698 + $0x20] sm:%s1691]
                %1709 = vst [vmem:[%s1699 + $0x40] sm:%s1691] %v1708
                %v1710 = vld [vmem:[%s1698 + $0x28] sm:%s1691]
                %1711 = vst [vmem:[%s1699 + $0x50] sm:%s1691] %v1710
                %v1712 = vld [vmem:[%s1698 + $0x30] sm:%s1691]
                %1713 = vst [vmem:[%s1699 + $0x60] sm:%s1691] %v1712
                %v1714 = vld [vmem:[%s1698 + $0x38] sm:%s1691]
                %1715 = vst [vmem:[%s1699 + $0x70] sm:%s1691] %v1714
                %v1716 = vld [vmem:[%s1698 + $0x40] sm:%s1691]
                %1717 = vst [vmem:[%s1699 + $0x80] sm:%s1691] %v1716
                %v1718 = vld [vmem:[%s1698 + $0x48] sm:%s1691]
                %1719 = vst [vmem:[%s1699 + $0x90] sm:%s1691] %v1718
                %v1720 = vld [vmem:[%s1698 + $0x50] sm:%s1691]
                %1721 = vst [vmem:[%s1699 + $0xa0] sm:%s1691] %v1720
                %v1722 = vld [vmem:[%s1698 + $0x58] sm:%s1691]
                %1723 = vst [vmem:[%s1699 + $0xb0] sm:%s1691] %v1722
                %v1724 = vld [vmem:[%s1698 + $0x60] sm:%s1691]
                %1725 = vst [vmem:[%s1699 + $0xc0] sm:%s1691] %v1724
                %v1726 = vld [vmem:[%s1698 + $0x68] sm:%s1691]
                %1727 = vst [vmem:[%s1699 + $0xd0] sm:%s1691] %v1726
                %v1728 = vld [vmem:[%s1698 + $0x70] sm:%s1691]
                %1729 = vst [vmem:[%s1699 + $0xe0] sm:%s1691] %v1728
                %v1730 = vld [vmem:[%s1698 + $0x78] sm:%s1691]
                %1731 = vst [vmem:[%s1699 + $0xf0] sm:%s1691] %v1730
              $region107: #{_ealstm_model_forward_impl.1} parent=101 // loop_footer
                %s1697 = sadd.s32 1, %s1693
              $region108: #{_ealstm_model_forward_impl.1} parent=101 // loop_footer_branch
                %1692 = sbr.rel target = $region104
              $region109: #{_ealstm_model_forward_impl.1} parent=101 // loop_exit
                _
            $region102: #{_ealstm_model_forward_impl.1} parent=93 // pred_fallthru
              _
          $region94: #{_ealstm_model_forward_impl.1} parent=89 // pred_fallthru
            _
          %1776 = vnop
        $region90: #{_ealstm_model_forward_impl.1} parent=81 // pred_fallthru
          _
        // Predicated region
        $region125: #{_ealstm_model_forward_impl.1} parent=81 // pred_check
          %p1777 = pneg %p221
        $region126: #{_ealstm_model_forward_impl.1} parent=81 // pred_check_branch
          %1779 = sbr.rel (%p1777) target = $region128
        $region127: #{_ealstm_model_forward_impl.1} parent=81 // pred_region
          %s1780 = smul.addr %s20, 8
          %s1781 = scalar_lea.vmem %s8, %s1780
          // Predicated region
          $region129: #{_ealstm_model_forward_impl.1} parent=127 // pred_check
            _
          $region130: #{_ealstm_model_forward_impl.1} parent=127 // pred_check_branch
            %1783 = sbr.rel (0) target = $region132
          $region131: #{_ealstm_model_forward_impl.1} parent=127 // pred_region
            // Predicated region
            $region133: #{_ealstm_model_forward_impl.1} parent=131 // pred_check
              _
            $region134: #{_ealstm_model_forward_impl.1} parent=131 // pred_check_branch
              %1785 = sbr.rel (0) target = $region136
            $region135: #{_ealstm_model_forward_impl.1} parent=131 // pred_region
              // Predicated region
              $region148: #{_ealstm_model_forward_impl.1} parent=135 // pred_check
                _
              $region149: #{_ealstm_model_forward_impl.1} parent=135 // pred_check_branch
                %1831 = sbr.rel (0) target = $region151
              $region150: #{_ealstm_model_forward_impl.1} parent=135 // pred_region
                loop: start=0, step=1, limit=1
                $region152: #{_ealstm_model_forward_impl.1} parent=150 // loop_pre_header
                  _
                $region153: #{_ealstm_model_forward_impl.1} parent=150 // loop_header
                  %s1833 = sphi 0, %s1837
                  %p1834 = scmp.ge.s32.totalorder %s1833, 1
                  %s1838 = sphi %s1678, %s1678
                  %s1839 = sphi %s1781, %s1781
                $region154: #{_ealstm_model_forward_impl.1} parent=150 // loop_header_branch
                  %1836 = sbr.rel (%p1834) target = $region158
                $region155: #{_ealstm_model_forward_impl.1} parent=150 // loop_body
                  %v1840 = vld [vmem:[%s1838] sm:$0xff]
                  %1841 = vst [vmem:[%s1839] sm:$0xff] %v1840
                  %v1842 = vld [vmem:[%s1838 + $0x8] sm:$0xff]
                  %1843 = vst [vmem:[%s1839 + $0x10] sm:$0xff] %v1842
                  %v1844 = vld [vmem:[%s1838 + $0x10] sm:$0xff]
                  %1845 = vst [vmem:[%s1839 + $0x20] sm:$0xff] %v1844
                  %v1846 = vld [vmem:[%s1838 + $0x18] sm:$0xff]
                  %1847 = vst [vmem:[%s1839 + $0x30] sm:$0xff] %v1846
                  %v1848 = vld [vmem:[%s1838 + $0x20] sm:$0xff]
                  %1849 = vst [vmem:[%s1839 + $0x40] sm:$0xff] %v1848
                  %v1850 = vld [vmem:[%s1838 + $0x28] sm:$0xff]
                  %1851 = vst [vmem:[%s1839 + $0x50] sm:$0xff] %v1850
                  %v1852 = vld [vmem:[%s1838 + $0x30] sm:$0xff]
                  %1853 = vst [vmem:[%s1839 + $0x60] sm:$0xff] %v1852
                  %v1854 = vld [vmem:[%s1838 + $0x38] sm:$0xff]
                  %1855 = vst [vmem:[%s1839 + $0x70] sm:$0xff] %v1854
                  %v1856 = vld [vmem:[%s1838 + $0x40] sm:$0xff]
                  %1857 = vst [vmem:[%s1839 + $0x80] sm:$0xff] %v1856
                  %v1858 = vld [vmem:[%s1838 + $0x48] sm:$0xff]
                  %1859 = vst [vmem:[%s1839 + $0x90] sm:$0xff] %v1858
                  %v1860 = vld [vmem:[%s1838 + $0x50] sm:$0xff]
                  %1861 = vst [vmem:[%s1839 + $0xa0] sm:$0xff] %v1860
                  %v1862 = vld [vmem:[%s1838 + $0x58] sm:$0xff]
                  %1863 = vst [vmem:[%s1839 + $0xb0] sm:$0xff] %v1862
                  %v1864 = vld [vmem:[%s1838 + $0x60] sm:$0xff]
                  %1865 = vst [vmem:[%s1839 + $0xc0] sm:$0xff] %v1864
                  %v1866 = vld [vmem:[%s1838 + $0x68] sm:$0xff]
                  %1867 = vst [vmem:[%s1839 + $0xd0] sm:$0xff] %v1866
                  %v1868 = vld [vmem:[%s1838 + $0x70] sm:$0xff]
                  %1869 = vst [vmem:[%s1839 + $0xe0] sm:$0xff] %v1868
                  %v1870 = vld [vmem:[%s1838 + $0x78] sm:$0xff]
                  %1871 = vst [vmem:[%s1839 + $0xf0] sm:$0xff] %v1870
                $region156: #{_ealstm_model_forward_impl.1} parent=150 // loop_footer
                  %s1837 = sadd.s32 1, %s1833
                $region157: #{_ealstm_model_forward_impl.1} parent=150 // loop_footer_branch
                  %1832 = sbr.rel target = $region153
                $region158: #{_ealstm_model_forward_impl.1} parent=150 // loop_exit
                  _
              $region151: #{_ealstm_model_forward_impl.1} parent=135 // pred_fallthru
                _
              // Predicated region
              $region159: #{_ealstm_model_forward_impl.1} parent=135 // pred_check
                _
              $region160: #{_ealstm_model_forward_impl.1} parent=135 // pred_check_branch
                %1873 = sbr.rel target = $region162
              $region161: #{_ealstm_model_forward_impl.1} parent=135 // pred_region
                _
              $region162: #{_ealstm_model_forward_impl.1} parent=135 // pred_fallthru
                _
            $region136: #{_ealstm_model_forward_impl.1} parent=131 // pred_fallthru
              _
            // Predicated region
            $region137: #{_ealstm_model_forward_impl.1} parent=131 // pred_check
              _
            $region138: #{_ealstm_model_forward_impl.1} parent=131 // pred_check_branch
              %1787 = sbr.rel target = $region140
            $region139: #{_ealstm_model_forward_impl.1} parent=131 // pred_region
              %s1789 = ssub.s32 256, 1
              loop: start=0, step=1, limit=1
              $region141: #{_ealstm_model_forward_impl.1} parent=139 // loop_pre_header
                _
              $region142: #{_ealstm_model_forward_impl.1} parent=139 // loop_header
                %s1791 = sphi 0, %s1795
                %p1792 = scmp.ge.s32.totalorder %s1791, 1
                %s1796 = sphi %s1678, %s1678
                %s1797 = sphi %s1781, %s1781
              $region143: #{_ealstm_model_forward_impl.1} parent=139 // loop_header_branch
                %1794 = sbr.rel (%p1792) target = $region147
              $region144: #{_ealstm_model_forward_impl.1} parent=139 // loop_body
                %v1798 = vld [vmem:[%s1796] sm:%s1789]
                %1799 = vst [vmem:[%s1797] sm:%s1789] %v1798
                %v1800 = vld [vmem:[%s1796 + $0x8] sm:%s1789]
                %1801 = vst [vmem:[%s1797 + $0x10] sm:%s1789] %v1800
                %v1802 = vld [vmem:[%s1796 + $0x10] sm:%s1789]
                %1803 = vst [vmem:[%s1797 + $0x20] sm:%s1789] %v1802
                %v1804 = vld [vmem:[%s1796 + $0x18] sm:%s1789]
                %1805 = vst [vmem:[%s1797 + $0x30] sm:%s1789] %v1804
                %v1806 = vld [vmem:[%s1796 + $0x20] sm:%s1789]
                %1807 = vst [vmem:[%s1797 + $0x40] sm:%s1789] %v1806
                %v1808 = vld [vmem:[%s1796 + $0x28] sm:%s1789]
                %1809 = vst [vmem:[%s1797 + $0x50] sm:%s1789] %v1808
                %v1810 = vld [vmem:[%s1796 + $0x30] sm:%s1789]
                %1811 = vst [vmem:[%s1797 + $0x60] sm:%s1789] %v1810
                %v1812 = vld [vmem:[%s1796 + $0x38] sm:%s1789]
                %1813 = vst [vmem:[%s1797 + $0x70] sm:%s1789] %v1812
                %v1814 = vld [vmem:[%s1796 + $0x40] sm:%s1789]
                %1815 = vst [vmem:[%s1797 + $0x80] sm:%s1789] %v1814
                %v1816 = vld [vmem:[%s1796 + $0x48] sm:%s1789]
                %1817 = vst [vmem:[%s1797 + $0x90] sm:%s1789] %v1816
                %v1818 = vld [vmem:[%s1796 + $0x50] sm:%s1789]
                %1819 = vst [vmem:[%s1797 + $0xa0] sm:%s1789] %v1818
                %v1820 = vld [vmem:[%s1796 + $0x58] sm:%s1789]
                %1821 = vst [vmem:[%s1797 + $0xb0] sm:%s1789] %v1820
                %v1822 = vld [vmem:[%s1796 + $0x60] sm:%s1789]
                %1823 = vst [vmem:[%s1797 + $0xc0] sm:%s1789] %v1822
                %v1824 = vld [vmem:[%s1796 + $0x68] sm:%s1789]
                %1825 = vst [vmem:[%s1797 + $0xd0] sm:%s1789] %v1824
                %v1826 = vld [vmem:[%s1796 + $0x70] sm:%s1789]
                %1827 = vst [vmem:[%s1797 + $0xe0] sm:%s1789] %v1826
                %v1828 = vld [vmem:[%s1796 + $0x78] sm:%s1789]
                %1829 = vst [vmem:[%s1797 + $0xf0] sm:%s1789] %v1828
              $region145: #{_ealstm_model_forward_impl.1} parent=139 // loop_footer
                %s1795 = sadd.s32 1, %s1791
              $region146: #{_ealstm_model_forward_impl.1} parent=139 // loop_footer_branch
                %1790 = sbr.rel target = $region142
              $region147: #{_ealstm_model_forward_impl.1} parent=139 // loop_exit
                _
            $region140: #{_ealstm_model_forward_impl.1} parent=131 // pred_fallthru
              _
          $region132: #{_ealstm_model_forward_impl.1} parent=127 // pred_fallthru
            _
          %1874 = vnop
        $region128: #{_ealstm_model_forward_impl.1} parent=81 // pred_fallthru
          _
      $region82: #{_ealstm_model_forward_impl.1} parent=5 // pred_fallthru
        _
      %p1875 = scmp.le.s32.totalorder 2, %s15
      // Predicated region
      $region163: #{_ealstm_model_forward_impl.1} parent=5 // pred_check
        %p1876 = pneg %p1875
      $region164: #{_ealstm_model_forward_impl.1} parent=5 // pred_check_branch
        %1878 = sbr.rel (%p1876) target = $region166
      $region165: #{_ealstm_model_forward_impl.1} parent=5 // pred_region
        %s1879 = ssub.s32 %s15, 2
        // Predicated region
        $region167: #{_ealstm_model_forward_impl.1} parent=165 // pred_check
          %p1880 = pneg %p201
        $region168: #{_ealstm_model_forward_impl.1} parent=165 // pred_check_branch
          %1882 = sbr.rel (%p1880) target = $region170
        $region169: #{_ealstm_model_forward_impl.1} parent=165 // pred_region
          %s1883 = sand.u32 %s186, 1
          %s1884 = sand.u32 %s186, 1
          %s1885 = smul.addr %s1884, 128
          %s1886 = scalar_lea.vmem [#allocation4], %s1885
        $region170: #{_ealstm_model_forward_impl.1} parent=165 // pred_fallthru
          _
        // Predicated region
        $region171: #{_ealstm_model_forward_impl.1} parent=165 // pred_check
          %p1887 = pneg %p227
        $region172: #{_ealstm_model_forward_impl.1} parent=165 // pred_check_branch
          %1889 = sbr.rel (%p1887) target = $region174
        $region173: #{_ealstm_model_forward_impl.1} parent=165 // pred_region
          %s1890 = sand.u32 %s212, 1
          %s1891 = sand.u32 %s212, 1
          %s1892 = smul.addr %s1891, 128
          %s1893 = scalar_lea.vmem [#allocation5], %s1892
        $region174: #{_ealstm_model_forward_impl.1} parent=165 // pred_fallthru
          _
      $region166: #{_ealstm_model_forward_impl.1} parent=5 // pred_fallthru
        _
    $region6: #{_ealstm_model_forward_impl.1} parent=1 // loop_footer
      %s19 = sadd.s32 1, %s15
    $region7: #{_ealstm_model_forward_impl.1} parent=1 // loop_footer_branch
      %14 = sbr.rel target = $region3
    $region8: #{_ealstm_model_forward_impl.1} parent=1 // loop_exit
      _

</llo_original>
